<compile_context>
chip_gen: v5e
topology: v5e:2x2
jax: 0.10.0
libtpu: 0.0.40
codegen_flags: <defaults>
</compile_context>

<pallas_src>
import jax
import jax.numpy as jnp
from jax.experimental import pallas as pl
from jax.experimental.pallas import tpu as pltpu

EPS = 1e-5


def _fused_kernel(x_ref, res_ref, g1_ref, b1_ref, w_ref, g2_ref, b2_ref, out_ref):
    # All refs are full arrays resident in VMEM (tiny: C=208, P=196, <1 MiB total).
    x = x_ref[...]                                     # (Cin, P)  f32
    res = res_ref[...]                                 # (Cin, P)  f32

    # ---- BatchNorm2d #1: one-pass stats over the P (lane) axis, folded affine ----
    m1 = jnp.mean(x, axis=-1, keepdims=True)           # (Cin, 1)
    m1sq = jnp.mean(x * x, axis=-1, keepdims=True)
    var1 = jnp.maximum(m1sq - m1 * m1, 0.0)            # clamp: guard rsqrt vs tiny negatives
    scale1 = g1_ref[...] * jax.lax.rsqrt(var1 + EPS)   # (Cin, 1)
    shift1 = b1_ref[...] - m1 * scale1

    # ---- fused BN1 + residual add + ReLU ----
    y = jnp.maximum(x * scale1 + shift1 + res, 0.0)    # (Cin, P)

    # ---- 1x1 Conv2d (no bias) == (Cout, Cin) @ (Cin, P) on the MXU ----
    z = jnp.dot(w_ref[...], y, preferred_element_type=jnp.float32)  # (Cout, P)

    # ---- BatchNorm2d #2: one-pass stats, folded affine ----
    m2 = jnp.mean(z, axis=-1, keepdims=True)           # (Cout, 1)
    m2sq = jnp.mean(z * z, axis=-1, keepdims=True)
    var2 = jnp.maximum(m2sq - m2 * m2, 0.0)
    scale2 = g2_ref[...] * jax.lax.rsqrt(var2 + EPS)
    shift2 = b2_ref[...] - m2 * scale2

    out_ref[...] = z * scale2 + shift2


def fused_bn_add_relu_conv_bn(x72, x87, gamma1, beta1, conv_w, gamma2, beta2):
    """x72, x87: NCHW float32. conv_w: (Cout, Cin) squeezed 1x1 kernel."""
    N, C, H, W = x72.shape
    P = N * H * W
    Cout = conv_w.shape[0]

    def to_cp(x):
        # N == 1 (module spec): pure reshape, no data movement / no transpose op.
        if N == 1:
            return x.reshape(C, P)
        # General N: single transpose to channels-major (only path that needs it).
        return jnp.transpose(x, (1, 0, 2, 3)).reshape(C, P)

    x72_cp = to_cp(x72)
    x87_cp = to_cp(x87)

    g1 = gamma1.reshape(C, 1)
    b1 = beta1.reshape(C, 1)
    g2 = gamma2.reshape(Cout, 1)
    b2 = beta2.reshape(Cout, 1)

    vmem = pl.BlockSpec(memory_space=pltpu.MemorySpace.VMEM)
    cost = pl.CostEstimate(
        flops=2 * P * C * Cout + 12 * P * C,
        transcendentals=2 * (C + Cout),
        bytes_accessed=4 * (2 * P * C + P * Cout + C * Cout + 2 * (C + Cout)),
    )

    # Grid-less: everything fits comfortably in VMEM on v5e/v6e/v7x; any grid
    # step would just add per-step overhead with nothing to hide.
    out_cp = pl.pallas_call(
        _fused_kernel,
        out_shape=jax.ShapeDtypeStruct((Cout, P), jnp.float32),
        in_specs=[vmem] * 7,
        out_specs=vmem,
        cost_estimate=cost,
    )(x72_cp, x87_cp, g1, b1, conv_w, g2, b2)

    if N == 1:
        return out_cp.reshape(1, Cout, H, W)           # free reshape back to NCHW
    return jnp.transpose(out_cp.reshape(Cout, N, H, W), (1, 0, 2, 3))


def _reference(x72, x87, gamma1, beta1, conv_w, gamma2, beta2):
    def bn(x, g, b):
        mean = jnp.mean(x, axis=(0, 2, 3), keepdims=True)
        var = jnp.mean((x - mean) ** 2, axis=(0, 2, 3), keepdims=True)
        return (x - mean) * jax.lax.rsqrt(var + EPS) * g.reshape(1, -1, 1, 1) \
               + b.reshape(1, -1, 1, 1)

    y = jnp.maximum(bn(x72, gamma1, beta1) + x87, 0.0)
    z = jnp.einsum("nihw,oi->nohw", y, conv_w)
    return bn(z, gamma2, beta2)


if __name__ == "__main__":
    C, H, W, N = 208, 14, 14, 1
    key = jax.random.PRNGKey(0)
    k1, k2, k3 = jax.random.split(key, 3)

    x72 = jax.random.normal(k1, (N, C, H, W), dtype=jnp.float32)
    x87 = jax.random.normal(k2, (N, C, H, W), dtype=jnp.float32)

    # Deterministic parameter init (matches module __init__ shapes).
    gamma1 = jnp.ones((C,), jnp.float32)
    beta1 = jnp.zeros((C,), jnp.float32)
    gamma2 = jnp.ones((C,), jnp.float32)
    beta2 = jnp.zeros((C,), jnp.float32)
    conv_w = jax.random.normal(k3, (C, C), dtype=jnp.float32) * 0.05  # (Cout, Cin) 1x1 kernel

    out = fused_bn_add_relu_conv_bn(x72, x87, gamma1, beta1, conv_w, gamma2, beta2)
    out = jax.block_until_ready(out)

    ref = _reference(x72, x87, gamma1, beta1, conv_w, gamma2, beta2)
    assert out.shape == (N, C, H, W)
    assert jnp.allclose(out, ref, atol=1e-3, rtol=1e-3), "mismatch vs reference"
    print("KERNEL_OK")
</pallas_src>

<mosaic_0001>
module attributes {stable_mosaic.version = 11 : i64} {
  func.func @_fused_kernel(%arg0: memref<208x196xf32, #tpu.memory_space<vmem>>, %arg1: memref<208x196xf32, #tpu.memory_space<vmem>>, %arg2: memref<208x1xf32, #tpu.memory_space<vmem>>, %arg3: memref<208x1xf32, #tpu.memory_space<vmem>>, %arg4: memref<208x208xf32, #tpu.memory_space<vmem>>, %arg5: memref<208x1xf32, #tpu.memory_space<vmem>>, %arg6: memref<208x1xf32, #tpu.memory_space<vmem>>, %arg7: memref<208x196xf32, #tpu.memory_space<vmem>>) attributes {dimension_semantics = [], scalar_prefetch = 0 : i64, scratch_operands = 0 : i64, tpu.core_type = #tpu.core_type<tc>} {
    %c0 = arith.constant 0 : index
    %c0_0 = arith.constant 0 : index
    %0 = vector.load %arg0[%c0, %c0_0] : memref<208x196xf32, #tpu.memory_space<vmem>>, vector<208x196xf32>
    %c0_1 = arith.constant 0 : index
    %c0_2 = arith.constant 0 : index
    %1 = vector.load %arg1[%c0_1, %c0_2] : memref<208x196xf32, #tpu.memory_space<vmem>>, vector<208x196xf32>
    %cst = arith.constant dense<0.000000e+00> : vector<208xf32>
    %2 = vector.multi_reduction <add>, %0, %cst [1] : vector<208x196xf32> to vector<208xf32>
    %3 = vector.shape_cast %2 : vector<208xf32> to vector<208x1xf32>
    %cst_3 = arith.constant 1.960000e+02 : f32
    %4 = vector.broadcast %cst_3 : f32 to vector<208x1xf32>
    %5 = arith.divf %3, %4 : vector<208x1xf32>
    %6 = arith.mulf %0, %0 : vector<208x196xf32>
    %cst_4 = arith.constant dense<0.000000e+00> : vector<208xf32>
    %7 = vector.multi_reduction <add>, %6, %cst_4 [1] : vector<208x196xf32> to vector<208xf32>
    %8 = vector.shape_cast %7 : vector<208xf32> to vector<208x1xf32>
    %cst_5 = arith.constant 1.960000e+02 : f32
    %9 = vector.broadcast %cst_5 : f32 to vector<208x1xf32>
    %10 = arith.divf %8, %9 : vector<208x1xf32>
    %11 = arith.mulf %5, %5 : vector<208x1xf32>
    %12 = arith.subf %10, %11 : vector<208x1xf32>
    %cst_6 = arith.constant 0.000000e+00 : f32
    %13 = vector.broadcast %cst_6 : f32 to vector<208x1xf32>
    %14 = arith.maximumf %12, %13 : vector<208x1xf32>
    %c0_7 = arith.constant 0 : index
    %c0_8 = arith.constant 0 : index
    %15 = vector.load %arg2[%c0_7, %c0_8] : memref<208x1xf32, #tpu.memory_space<vmem>>, vector<208x1xf32>
    %cst_9 = arith.constant 9.99999974E-6 : f32
    %16 = vector.broadcast %cst_9 : f32 to vector<208x1xf32>
    %17 = arith.addf %14, %16 : vector<208x1xf32>
    %18 = math.rsqrt %17 : vector<208x1xf32>
    %19 = arith.mulf %15, %18 : vector<208x1xf32>
    %c0_10 = arith.constant 0 : index
    %c0_11 = arith.constant 0 : index
    %20 = vector.load %arg3[%c0_10, %c0_11] : memref<208x1xf32, #tpu.memory_space<vmem>>, vector<208x1xf32>
    %21 = arith.mulf %5, %19 : vector<208x1xf32>
    %22 = arith.subf %20, %21 : vector<208x1xf32>
    %23 = vector.broadcast %19 : vector<208x1xf32> to vector<208x196xf32>
    %24 = arith.mulf %0, %23 : vector<208x196xf32>
    %25 = vector.broadcast %22 : vector<208x1xf32> to vector<208x196xf32>
    %26 = arith.addf %24, %25 : vector<208x196xf32>
    %27 = arith.addf %26, %1 : vector<208x196xf32>
    %cst_12 = arith.constant 0.000000e+00 : f32
    %28 = vector.broadcast %cst_12 : f32 to vector<208x196xf32>
    %29 = arith.maximumf %27, %28 : vector<208x196xf32>
    %c0_13 = arith.constant 0 : index
    %c0_14 = arith.constant 0 : index
    %30 = vector.load %arg4[%c0_13, %c0_14] : memref<208x208xf32, #tpu.memory_space<vmem>>, vector<208x208xf32>
    %cst_15 = arith.constant dense<0.000000e+00> : vector<208x196xf32>
    %31 = tpu.matmul %30, %29, %cst_15 {dimension_numbers = #tpu.dot_dimension_numbers<[1], [0], [0], [1], [0, 0, 1, 1], [], []>} : vector<208x208xf32>, vector<208x196xf32>, vector<208x196xf32> -> vector<208x196xf32>
    %cst_16 = arith.constant dense<0.000000e+00> : vector<208xf32>
    %32 = vector.multi_reduction <add>, %31, %cst_16 [1] : vector<208x196xf32> to vector<208xf32>
    %33 = vector.shape_cast %32 : vector<208xf32> to vector<208x1xf32>
    %cst_17 = arith.constant 1.960000e+02 : f32
    %34 = vector.broadcast %cst_17 : f32 to vector<208x1xf32>
    %35 = arith.divf %33, %34 : vector<208x1xf32>
    %36 = arith.mulf %31, %31 : vector<208x196xf32>
    %cst_18 = arith.constant dense<0.000000e+00> : vector<208xf32>
    %37 = vector.multi_reduction <add>, %36, %cst_18 [1] : vector<208x196xf32> to vector<208xf32>
    %38 = vector.shape_cast %37 : vector<208xf32> to vector<208x1xf32>
    %cst_19 = arith.constant 1.960000e+02 : f32
    %39 = vector.broadcast %cst_19 : f32 to vector<208x1xf32>
    %40 = arith.divf %38, %39 : vector<208x1xf32>
    %41 = arith.mulf %35, %35 : vector<208x1xf32>
    %42 = arith.subf %40, %41 : vector<208x1xf32>
    %cst_20 = arith.constant 0.000000e+00 : f32
    %43 = vector.broadcast %cst_20 : f32 to vector<208x1xf32>
    %44 = arith.maximumf %42, %43 : vector<208x1xf32>
    %c0_21 = arith.constant 0 : index
    %c0_22 = arith.constant 0 : index
    %45 = vector.load %arg5[%c0_21, %c0_22] : memref<208x1xf32, #tpu.memory_space<vmem>>, vector<208x1xf32>
    %cst_23 = arith.constant 9.99999974E-6 : f32
    %46 = vector.broadcast %cst_23 : f32 to vector<208x1xf32>
    %47 = arith.addf %44, %46 : vector<208x1xf32>
    %48 = math.rsqrt %47 : vector<208x1xf32>
    %49 = arith.mulf %45, %48 : vector<208x1xf32>
    %c0_24 = arith.constant 0 : index
    %c0_25 = arith.constant 0 : index
    %50 = vector.load %arg6[%c0_24, %c0_25] : memref<208x1xf32, #tpu.memory_space<vmem>>, vector<208x1xf32>
    %51 = arith.mulf %35, %49 : vector<208x1xf32>
    %52 = arith.subf %50, %51 : vector<208x1xf32>
    %53 = vector.broadcast %49 : vector<208x1xf32> to vector<208x196xf32>
    %54 = arith.mulf %31, %53 : vector<208x196xf32>
    %55 = vector.broadcast %52 : vector<208x1xf32> to vector<208x196xf32>
    %56 = arith.addf %54, %55 : vector<208x196xf32>
    %c0_26 = arith.constant 0 : index
    %c0_27 = arith.constant 0 : index
    %57 = vector.load %arg7[%c0_26, %c0_27] : memref<208x196xf32, #tpu.memory_space<vmem>>, vector<208x196xf32>
    tpu.vector_store %arg7[%c0_26, %c0_27], %56 {strides = array<i32>} : memref<208x196xf32, #tpu.memory_space<vmem>>, vector<208x196xf32>,
    return
  }
}

</mosaic_0001>

<llo_original>
// kernel: tpu_custom_call.1
$region0: #{tpu_custom_call.1}
  #allocation0 [shape = 'u32[]', space=smem, size = 0x4, offset = 0x4, fixed_abs, tag = 'smem constant byte address 0x4 - core index']
  #allocation1 [shape = 'u32[72,128]{1,0:T(1,128)}', space=vmem, size = 0x9000, scoped, tag = 'internal scratch']
  %s0 = inlined_call_operand.vmem [shape: f32[208,196], index: 0, kind: input, shape index: {}]
  %s1 = inlined_call_operand.vmem [shape: f32[208,196], index: 1, kind: input, shape index: {}]
  %s2 = inlined_call_operand.vmem [shape: f32[208,1], index: 2, kind: input, shape index: {}]
  %s3 = inlined_call_operand.vmem [shape: f32[208,1], index: 3, kind: input, shape index: {}]
  %s4 = inlined_call_operand.vmem [shape: f32[208,208], index: 4, kind: input, shape index: {}]
  %s5 = inlined_call_operand.vmem [shape: f32[208,1], index: 5, kind: input, shape index: {}]
  %s6 = inlined_call_operand.vmem [shape: f32[208,1], index: 6, kind: input, shape index: {}]
  %s7 = inlined_call_operand.vmem [shape: f32[208,196], index: 7, kind: output, shape index: {}]
  %s8 = sld [smem:[#allocation0]]
  $region38: #{tpu_custom_call.1} parent=0
    _
  %s10 = ssub.s32 1, %s8
  %s11 = scalar_select 0, %s10, %s8
  // Predicated region
  $region2: #{tpu_custom_call.1} parent=0 // pred_check
    _
  $region3: #{tpu_custom_call.1} parent=0 // pred_check_branch
    %13 = sbr.rel (0) target = $region5
  $region4: #{tpu_custom_call.1} parent=0 // pred_region
    _
  $region5: #{tpu_custom_call.1} parent=0 // pred_fallthru
    _
  // Predicated region
  $region6: #{tpu_custom_call.1} parent=0 // pred_check
    _
  $region7: #{tpu_custom_call.1} parent=0 // pred_check_branch
    %15 = sbr.rel (0) target = $region9
  $region8: #{tpu_custom_call.1} parent=0 // pred_region
    _
  $region9: #{tpu_custom_call.1} parent=0 // pred_fallthru
    _
  // Predicated region
  $region10: #{tpu_custom_call.1} parent=0 // pred_check
    _
  $region11: #{tpu_custom_call.1} parent=0 // pred_check_branch
    %17 = sbr.rel (0) target = $region13
  $region12: #{tpu_custom_call.1} parent=0 // pred_region
    _
  $region13: #{tpu_custom_call.1} parent=0 // pred_fallthru
    _
  // Predicated region
  $region14: #{tpu_custom_call.1} parent=0 // pred_check
    _
  $region15: #{tpu_custom_call.1} parent=0 // pred_check_branch
    %19 = sbr.rel (0) target = $region17
  $region16: #{tpu_custom_call.1} parent=0 // pred_region
    _
  $region17: #{tpu_custom_call.1} parent=0 // pred_fallthru
    _
  // Predicated region
  $region18: #{tpu_custom_call.1} parent=0 // pred_check
    _
  $region19: #{tpu_custom_call.1} parent=0 // pred_check_branch
    %21 = sbr.rel (0) target = $region21
  $region20: #{tpu_custom_call.1} parent=0 // pred_region
    _
  $region21: #{tpu_custom_call.1} parent=0 // pred_fallthru
    _
  // Predicated region
  $region22: #{tpu_custom_call.1} parent=0 // pred_check
    _
  $region23: #{tpu_custom_call.1} parent=0 // pred_check_branch
    %23 = sbr.rel (0) target = $region25
  $region24: #{tpu_custom_call.1} parent=0 // pred_region
    _
  $region25: #{tpu_custom_call.1} parent=0 // pred_fallthru
    _
  // Predicated region
  $region26: #{tpu_custom_call.1} parent=0 // pred_check
    _
  $region27: #{tpu_custom_call.1} parent=0 // pred_check_branch
    %25 = sbr.rel (0) target = $region29
  $region28: #{tpu_custom_call.1} parent=0 // pred_region
    _
  $region29: #{tpu_custom_call.1} parent=0 // pred_fallthru
    _
  %v26 = vld [vmem:[%s0] sm:$0xff]
  %v27 = vld [vmem:[%s0 + $0x8] sm:$0xff]
  %v28 = vld [vmem:[%s0 + $0x10] sm:$0xff]
  %v29 = vld [vmem:[%s0 + $0x18] sm:$0xff]
  %v30 = vld [vmem:[%s0 + $0x20] sm:$0xff]
  %v31 = vld [vmem:[%s0 + $0x28] sm:$0xff]
  %v32 = vld [vmem:[%s0 + $0x30] sm:$0xff]
  %v33 = vld [vmem:[%s0 + $0x38] sm:$0xff]
  %v34 = vld [vmem:[%s0 + $0x40] sm:$0xff]
  %v35 = vld [vmem:[%s0 + $0x48] sm:$0xff]
  %v36 = vld [vmem:[%s0 + $0x50] sm:$0xff]
  %v37 = vld [vmem:[%s0 + $0x58] sm:$0xff]
  %v38 = vld [vmem:[%s0 + $0x60] sm:$0xff]
  %v39 = vld [vmem:[%s0 + $0x68] sm:$0xff]
  %v40 = vld [vmem:[%s0 + $0x70] sm:$0xff]
  %v41 = vld [vmem:[%s0 + $0x78] sm:$0xff]
  %v42 = vld [vmem:[%s0 + $0x80] sm:$0xff]
  %v43 = vld [vmem:[%s0 + $0x88] sm:$0xff]
  %v44 = vld [vmem:[%s0 + $0x90] sm:$0xff]
  %v45 = vld [vmem:[%s0 + $0x98] sm:$0xff]
  %v46 = vld [vmem:[%s0 + $0xa0] sm:$0xff]
  %v47 = vld [vmem:[%s0 + $0xa8] sm:$0xff]
  %v48 = vld [vmem:[%s0 + $0xb0] sm:$0xff]
  %v49 = vld [vmem:[%s0 + $0xb8] sm:$0xff]
  %v50 = vld [vmem:[%s0 + $0xc0] sm:$0xff]
  %v51 = vld [vmem:[%s0 + $0xc8] sm:$0xff]
  %v52 = vld [vmem:[%s0 + $0xd0] sm:$0xff]
  %v53 = vld [vmem:[%s0 + $0xd8] sm:$0xff]
  %v54 = vld [vmem:[%s0 + $0xe0] sm:$0xff]
  %v55 = vld [vmem:[%s0 + $0xe8] sm:$0xff]
  %v56 = vld [vmem:[%s0 + $0xf0] sm:$0xff]
  %v57 = vld [vmem:[%s0 + $0xf8] sm:$0xff]
  %v58 = vld [vmem:[%s0 + $0x100] sm:$0xff]
  %v59 = vld [vmem:[%s0 + $0x108] sm:$0xff]
  %v60 = vld [vmem:[%s0 + $0x110] sm:$0xff]
  %v61 = vld [vmem:[%s0 + $0x118] sm:$0xff]
  %v62 = vld [vmem:[%s0 + $0x120] sm:$0xff]
  %v63 = vld [vmem:[%s0 + $0x128] sm:$0xff]
  %v64 = vld [vmem:[%s0 + $0x130] sm:$0xff]
  %v65 = vld [vmem:[%s0 + $0x138] sm:$0xff]
  %v66 = vld [vmem:[%s0 + $0x140] sm:$0xff]
  %v67 = vld [vmem:[%s0 + $0x148] sm:$0xff]
  %v68 = vld [vmem:[%s0 + $0x150] sm:$0xff]
  %v69 = vld [vmem:[%s0 + $0x158] sm:$0xff]
  %v70 = vld [vmem:[%s0 + $0x160] sm:$0xff]
  %v71 = vld [vmem:[%s0 + $0x168] sm:$0xff]
  %v72 = vld [vmem:[%s0 + $0x170] sm:$0xff]
  %v73 = vld [vmem:[%s0 + $0x178] sm:$0xff]
  %v74 = vld [vmem:[%s0 + $0x180] sm:$0xff]
  %v75 = vld [vmem:[%s0 + $0x188] sm:$0xff]
  %v76 = vld [vmem:[%s0 + $0x190] sm:$0xff]
  %v77 = vld [vmem:[%s0 + $0x198] sm:$0xff]
  %v78 = vld [vmem:[%s1] sm:$0xff]
  %v79 = vld [vmem:[%s1 + $0x8] sm:$0xff]
  %v80 = vld [vmem:[%s1 + $0x10] sm:$0xff]
  %v81 = vld [vmem:[%s1 + $0x18] sm:$0xff]
  %v82 = vld [vmem:[%s1 + $0x20] sm:$0xff]
  %v83 = vld [vmem:[%s1 + $0x28] sm:$0xff]
  %v84 = vld [vmem:[%s1 + $0x30] sm:$0xff]
  %v85 = vld [vmem:[%s1 + $0x38] sm:$0xff]
  %v86 = vld [vmem:[%s1 + $0x40] sm:$0xff]
  %v87 = vld [vmem:[%s1 + $0x48] sm:$0xff]
  %v88 = vld [vmem:[%s1 + $0x50] sm:$0xff]
  %v89 = vld [vmem:[%s1 + $0x58] sm:$0xff]
  %v90 = vld [vmem:[%s1 + $0x60] sm:$0xff]
  %v91 = vld [vmem:[%s1 + $0x68] sm:$0xff]
  %v92 = vld [vmem:[%s1 + $0x70] sm:$0xff]
  %v93 = vld [vmem:[%s1 + $0x78] sm:$0xff]
  %v94 = vld [vmem:[%s1 + $0x80] sm:$0xff]
  %v95 = vld [vmem:[%s1 + $0x88] sm:$0xff]
  %v96 = vld [vmem:[%s1 + $0x90] sm:$0xff]
  %v97 = vld [vmem:[%s1 + $0x98] sm:$0xff]
  %v98 = vld [vmem:[%s1 + $0xa0] sm:$0xff]
  %v99 = vld [vmem:[%s1 + $0xa8] sm:$0xff]
  %v100 = vld [vmem:[%s1 + $0xb0] sm:$0xff]
  %v101 = vld [vmem:[%s1 + $0xb8] sm:$0xff]
  %v102 = vld [vmem:[%s1 + $0xc0] sm:$0xff]
  %v103 = vld [vmem:[%s1 + $0xc8] sm:$0xff]
  %v104 = vld [vmem:[%s1 + $0xd0] sm:$0xff]
  %v105 = vld [vmem:[%s1 + $0xd8] sm:$0xff]
  %v106 = vld [vmem:[%s1 + $0xe0] sm:$0xff]
  %v107 = vld [vmem:[%s1 + $0xe8] sm:$0xff]
  %v108 = vld [vmem:[%s1 + $0xf0] sm:$0xff]
  %v109 = vld [vmem:[%s1 + $0xf8] sm:$0xff]
  %v110 = vld [vmem:[%s1 + $0x100] sm:$0xff]
  %v111 = vld [vmem:[%s1 + $0x108] sm:$0xff]
  %v112 = vld [vmem:[%s1 + $0x110] sm:$0xff]
  %v113 = vld [vmem:[%s1 + $0x118] sm:$0xff]
  %v114 = vld [vmem:[%s1 + $0x120] sm:$0xff]
  %v115 = vld [vmem:[%s1 + $0x128] sm:$0xff]
  %v116 = vld [vmem:[%s1 + $0x130] sm:$0xff]
  %v117 = vld [vmem:[%s1 + $0x138] sm:$0xff]
  %v118 = vld [vmem:[%s1 + $0x140] sm:$0xff]
  %v119 = vld [vmem:[%s1 + $0x148] sm:$0xff]
  %v120 = vld [vmem:[%s1 + $0x150] sm:$0xff]
  %v121 = vld [vmem:[%s1 + $0x158] sm:$0xff]
  %v122 = vld [vmem:[%s1 + $0x160] sm:$0xff]
  %v123 = vld [vmem:[%s1 + $0x168] sm:$0xff]
  %v124 = vld [vmem:[%s1 + $0x170] sm:$0xff]
  %v125 = vld [vmem:[%s1 + $0x178] sm:$0xff]
  %v126 = vld [vmem:[%s1 + $0x180] sm:$0xff]
  %v127 = vld [vmem:[%s1 + $0x188] sm:$0xff]
  %v128 = vld [vmem:[%s1 + $0x190] sm:$0xff]
  %v129 = vld [vmem:[%s1 + $0x198] sm:$0xff]
  %vm130 = vcmask 556032
  %v131 = vsel %vm130, %v27, 0.0
  %v132 = vadd.f32 %v26, %v131
  %133 = vadd.xlane.f32.xlu0 %v132
  %v134 = vpop.xlane.xlu0 %133
  %v135 = vsel %vm130, %v29, 0.0
  %v136 = vadd.f32 %v28, %v135
  %137 = vadd.xlane.f32.xlu0 %v136
  %v138 = vpop.xlane.xlu0 %137
  %v139 = vsel %vm130, %v31, 0.0
  %v140 = vadd.f32 %v30, %v139
  %141 = vadd.xlane.f32.xlu0 %v140
  %v142 = vpop.xlane.xlu0 %141
  %v143 = vsel %vm130, %v33, 0.0
  %v144 = vadd.f32 %v32, %v143
  %145 = vadd.xlane.f32.xlu0 %v144
  %v146 = vpop.xlane.xlu0 %145
  %v147 = vsel %vm130, %v35, 0.0
  %v148 = vadd.f32 %v34, %v147
  %149 = vadd.xlane.f32.xlu0 %v148
  %v150 = vpop.xlane.xlu0 %149
  %v151 = vsel %vm130, %v37, 0.0
  %v152 = vadd.f32 %v36, %v151
  %153 = vadd.xlane.f32.xlu0 %v152
  %v154 = vpop.xlane.xlu0 %153
  %v155 = vsel %vm130, %v39, 0.0
  %v156 = vadd.f32 %v38, %v155
  %157 = vadd.xlane.f32.xlu0 %v156
  %v158 = vpop.xlane.xlu0 %157
  %v159 = vsel %vm130, %v41, 0.0
  %v160 = vadd.f32 %v40, %v159
  %161 = vadd.xlane.f32.xlu0 %v160
  %v162 = vpop.xlane.xlu0 %161
  %v163 = vsel %vm130, %v43, 0.0
  %v164 = vadd.f32 %v42, %v163
  %165 = vadd.xlane.f32.xlu0 %v164
  %v166 = vpop.xlane.xlu0 %165
  %v167 = vsel %vm130, %v45, 0.0
  %v168 = vadd.f32 %v44, %v167
  %169 = vadd.xlane.f32.xlu0 %v168
  %v170 = vpop.xlane.xlu0 %169
  %v171 = vsel %vm130, %v47, 0.0
  %v172 = vadd.f32 %v46, %v171
  %173 = vadd.xlane.f32.xlu0 %v172
  %v174 = vpop.xlane.xlu0 %173
  %v175 = vsel %vm130, %v49, 0.0
  %v176 = vadd.f32 %v48, %v175
  %177 = vadd.xlane.f32.xlu0 %v176
  %v178 = vpop.xlane.xlu0 %177
  %v179 = vsel %vm130, %v51, 0.0
  %v180 = vadd.f32 %v50, %v179
  %181 = vadd.xlane.f32.xlu0 %v180
  %v182 = vpop.xlane.xlu0 %181
  %v183 = vsel %vm130, %v53, 0.0
  %v184 = vadd.f32 %v52, %v183
  %185 = vadd.xlane.f32.xlu0 %v184
  %v186 = vpop.xlane.xlu0 %185
  %v187 = vsel %vm130, %v55, 0.0
  %v188 = vadd.f32 %v54, %v187
  %189 = vadd.xlane.f32.xlu0 %v188
  %v190 = vpop.xlane.xlu0 %189
  %v191 = vsel %vm130, %v57, 0.0
  %v192 = vadd.f32 %v56, %v191
  %193 = vadd.xlane.f32.xlu0 %v192
  %v194 = vpop.xlane.xlu0 %193
  %v195 = vsel %vm130, %v59, 0.0
  %v196 = vadd.f32 %v58, %v195
  %197 = vadd.xlane.f32.xlu0 %v196
  %v198 = vpop.xlane.xlu0 %197
  %v199 = vsel %vm130, %v61, 0.0
  %v200 = vadd.f32 %v60, %v199
  %201 = vadd.xlane.f32.xlu0 %v200
  %v202 = vpop.xlane.xlu0 %201
  %v203 = vsel %vm130, %v63, 0.0
  %v204 = vadd.f32 %v62, %v203
  %205 = vadd.xlane.f32.xlu0 %v204
  %v206 = vpop.xlane.xlu0 %205
  %v207 = vsel %vm130, %v65, 0.0
  %v208 = vadd.f32 %v64, %v207
  %209 = vadd.xlane.f32.xlu0 %v208
  %v210 = vpop.xlane.xlu0 %209
  %v211 = vsel %vm130, %v67, 0.0
  %v212 = vadd.f32 %v66, %v211
  %213 = vadd.xlane.f32.xlu0 %v212
  %v214 = vpop.xlane.xlu0 %213
  %v215 = vsel %vm130, %v69, 0.0
  %v216 = vadd.f32 %v68, %v215
  %217 = vadd.xlane.f32.xlu0 %v216
  %v218 = vpop.xlane.xlu0 %217
  %v219 = vsel %vm130, %v71, 0.0
  %v220 = vadd.f32 %v70, %v219
  %221 = vadd.xlane.f32.xlu0 %v220
  %v222 = vpop.xlane.xlu0 %221
  %v223 = vsel %vm130, %v73, 0.0
  %v224 = vadd.f32 %v72, %v223
  %225 = vadd.xlane.f32.xlu0 %v224
  %v226 = vpop.xlane.xlu0 %225
  %v227 = vsel %vm130, %v75, 0.0
  %v228 = vadd.f32 %v74, %v227
  %229 = vadd.xlane.f32.xlu0 %v228
  %v230 = vpop.xlane.xlu0 %229
  %v231 = vsel %vm130, %v77, 0.0
  %v232 = vadd.f32 %v76, %v231
  %233 = vadd.xlane.f32.xlu0 %v232
  %v234 = vpop.xlane.xlu0 %233
  %v235 = vrcp.pop 196.0
  %v236 = vmul.f32 196.0, %v235
  %v237 = vsub.f32 1.0, %v236
  %v238 = vmul.f32 %v235, %v237
  %v239 = vadd.f32 %v235, %v238
  %vm240 = vweird.f32 %v235
  %v241 = vsel %vm240, %v235, %v239
  %v242 = vmul.f32 %v134, %v241
  %v243 = vmul.f32 %v138, %v241
  %v244 = vmul.f32 %v142, %v241
  %v245 = vmul.f32 %v146, %v241
  %v246 = vmul.f32 %v150, %v241
  %v247 = vmul.f32 %v154, %v241
  %v248 = vmul.f32 %v158, %v241
  %v249 = vmul.f32 %v162, %v241
  %v250 = vmul.f32 %v166, %v241
  %v251 = vmul.f32 %v170, %v241
  %v252 = vmul.f32 %v174, %v241
  %v253 = vmul.f32 %v178, %v241
  %v254 = vmul.f32 %v182, %v241
  %v255 = vmul.f32 %v186, %v241
  %v256 = vmul.f32 %v190, %v241
  %v257 = vmul.f32 %v194, %v241
  %v258 = vmul.f32 %v198, %v241
  %v259 = vmul.f32 %v202, %v241
  %v260 = vmul.f32 %v206, %v241
  %v261 = vmul.f32 %v210, %v241
  %v262 = vmul.f32 %v214, %v241
  %v263 = vmul.f32 %v218, %v241
  %v264 = vmul.f32 %v222, %v241
  %v265 = vmul.f32 %v226, %v241
  %v266 = vmul.f32 %v230, %v241
  %v267 = vmul.f32 %v234, %v241
  %v268 = vmul.f32 %v26, %v26
  %v269 = vmul.f32 %v27, %v27
  %v270 = vmul.f32 %v28, %v28
  %v271 = vmul.f32 %v29, %v29
  %v272 = vmul.f32 %v30, %v30
  %v273 = vmul.f32 %v31, %v31
  %v274 = vmul.f32 %v32, %v32
  %v275 = vmul.f32 %v33, %v33
  %v276 = vmul.f32 %v34, %v34
  %v277 = vmul.f32 %v35, %v35
  %v278 = vmul.f32 %v36, %v36
  %v279 = vmul.f32 %v37, %v37
  %v280 = vmul.f32 %v38, %v38
  %v281 = vmul.f32 %v39, %v39
  %v282 = vmul.f32 %v40, %v40
  %v283 = vmul.f32 %v41, %v41
  %v284 = vmul.f32 %v42, %v42
  %v285 = vmul.f32 %v43, %v43
  %v286 = vmul.f32 %v44, %v44
  %v287 = vmul.f32 %v45, %v45
  %v288 = vmul.f32 %v46, %v46
  %v289 = vmul.f32 %v47, %v47
  %v290 = vmul.f32 %v48, %v48
  %v291 = vmul.f32 %v49, %v49
  %v292 = vmul.f32 %v50, %v50
  %v293 = vmul.f32 %v51, %v51
  %v294 = vmul.f32 %v52, %v52
  %v295 = vmul.f32 %v53, %v53
  %v296 = vmul.f32 %v54, %v54
  %v297 = vmul.f32 %v55, %v55
  %v298 = vmul.f32 %v56, %v56
  %v299 = vmul.f32 %v57, %v57
  %v300 = vmul.f32 %v58, %v58
  %v301 = vmul.f32 %v59, %v59
  %v302 = vmul.f32 %v60, %v60
  %v303 = vmul.f32 %v61, %v61
  %v304 = vmul.f32 %v62, %v62
  %v305 = vmul.f32 %v63, %v63
  %v306 = vmul.f32 %v64, %v64
  %v307 = vmul.f32 %v65, %v65
  %v308 = vmul.f32 %v66, %v66
  %v309 = vmul.f32 %v67, %v67
  %v310 = vmul.f32 %v68, %v68
  %v311 = vmul.f32 %v69, %v69
  %v312 = vmul.f32 %v70, %v70
  %v313 = vmul.f32 %v71, %v71
  %v314 = vmul.f32 %v72, %v72
  %v315 = vmul.f32 %v73, %v73
  %v316 = vmul.f32 %v74, %v74
  %v317 = vmul.f32 %v75, %v75
  %v318 = vmul.f32 %v76, %v76
  %v319 = vmul.f32 %v77, %v77
  %v320 = vsel %vm130, %v269, 0.0
  %v321 = vadd.f32 %v268, %v320
  %322 = vadd.xlane.f32.xlu0 %v321
  %v323 = vpop.xlane.xlu0 %322
  %v324 = vsel %vm130, %v271, 0.0
  %v325 = vadd.f32 %v270, %v324
  %326 = vadd.xlane.f32.xlu0 %v325
  %v327 = vpop.xlane.xlu0 %326
  %v328 = vsel %vm130, %v273, 0.0
  %v329 = vadd.f32 %v272, %v328
  %330 = vadd.xlane.f32.xlu0 %v329
  %v331 = vpop.xlane.xlu0 %330
  %v332 = vsel %vm130, %v275, 0.0
  %v333 = vadd.f32 %v274, %v332
  %334 = vadd.xlane.f32.xlu0 %v333
  %v335 = vpop.xlane.xlu0 %334
  %v336 = vsel %vm130, %v277, 0.0
  %v337 = vadd.f32 %v276, %v336
  %338 = vadd.xlane.f32.xlu0 %v337
  %v339 = vpop.xlane.xlu0 %338
  %v340 = vsel %vm130, %v279, 0.0
  %v341 = vadd.f32 %v278, %v340
  %342 = vadd.xlane.f32.xlu0 %v341
  %v343 = vpop.xlane.xlu0 %342
  %v344 = vsel %vm130, %v281, 0.0
  %v345 = vadd.f32 %v280, %v344
  %346 = vadd.xlane.f32.xlu0 %v345
  %v347 = vpop.xlane.xlu0 %346
  %v348 = vsel %vm130, %v283, 0.0
  %v349 = vadd.f32 %v282, %v348
  %350 = vadd.xlane.f32.xlu0 %v349
  %v351 = vpop.xlane.xlu0 %350
  %v352 = vsel %vm130, %v285, 0.0
  %v353 = vadd.f32 %v284, %v352
  %354 = vadd.xlane.f32.xlu0 %v353
  %v355 = vpop.xlane.xlu0 %354
  %v356 = vsel %vm130, %v287, 0.0
  %v357 = vadd.f32 %v286, %v356
  %358 = vadd.xlane.f32.xlu0 %v357
  %v359 = vpop.xlane.xlu0 %358
  %v360 = vsel %vm130, %v289, 0.0
  %v361 = vadd.f32 %v288, %v360
  %362 = vadd.xlane.f32.xlu0 %v361
  %v363 = vpop.xlane.xlu0 %362
  %v364 = vsel %vm130, %v291, 0.0
  %v365 = vadd.f32 %v290, %v364
  %366 = vadd.xlane.f32.xlu0 %v365
  %v367 = vpop.xlane.xlu0 %366
  %v368 = vsel %vm130, %v293, 0.0
  %v369 = vadd.f32 %v292, %v368
  %370 = vadd.xlane.f32.xlu0 %v369
  %v371 = vpop.xlane.xlu0 %370
  %v372 = vsel %vm130, %v295, 0.0
  %v373 = vadd.f32 %v294, %v372
  %374 = vadd.xlane.f32.xlu0 %v373
  %v375 = vpop.xlane.xlu0 %374
  %v376 = vsel %vm130, %v297, 0.0
  %v377 = vadd.f32 %v296, %v376
  %378 = vadd.xlane.f32.xlu0 %v377
  %v379 = vpop.xlane.xlu0 %378
  %v380 = vsel %vm130, %v299, 0.0
  %v381 = vadd.f32 %v298, %v380
  %382 = vadd.xlane.f32.xlu0 %v381
  %v383 = vpop.xlane.xlu0 %382
  %v384 = vsel %vm130, %v301, 0.0
  %v385 = vadd.f32 %v300, %v384
  %386 = vadd.xlane.f32.xlu0 %v385
  %v387 = vpop.xlane.xlu0 %386
  %v388 = vsel %vm130, %v303, 0.0
  %v389 = vadd.f32 %v302, %v388
  %390 = vadd.xlane.f32.xlu0 %v389
  %v391 = vpop.xlane.xlu0 %390
  %v392 = vsel %vm130, %v305, 0.0
  %v393 = vadd.f32 %v304, %v392
  %394 = vadd.xlane.f32.xlu0 %v393
  %v395 = vpop.xlane.xlu0 %394
  %v396 = vsel %vm130, %v307, 0.0
  %v397 = vadd.f32 %v306, %v396
  %398 = vadd.xlane.f32.xlu0 %v397
  %v399 = vpop.xlane.xlu0 %398
  %v400 = vsel %vm130, %v309, 0.0
  %v401 = vadd.f32 %v308, %v400
  %402 = vadd.xlane.f32.xlu0 %v401
  %v403 = vpop.xlane.xlu0 %402
  %v404 = vsel %vm130, %v311, 0.0
  %v405 = vadd.f32 %v310, %v404
  %406 = vadd.xlane.f32.xlu0 %v405
  %v407 = vpop.xlane.xlu0 %406
  %v408 = vsel %vm130, %v313, 0.0
  %v409 = vadd.f32 %v312, %v408
  %410 = vadd.xlane.f32.xlu0 %v409
  %v411 = vpop.xlane.xlu0 %410
  %v412 = vsel %vm130, %v315, 0.0
  %v413 = vadd.f32 %v314, %v412
  %414 = vadd.xlane.f32.xlu0 %v413
  %v415 = vpop.xlane.xlu0 %414
  %v416 = vsel %vm130, %v317, 0.0
  %v417 = vadd.f32 %v316, %v416
  %418 = vadd.xlane.f32.xlu0 %v417
  %v419 = vpop.xlane.xlu0 %418
  %v420 = vsel %vm130, %v319, 0.0
  %v421 = vadd.f32 %v318, %v420
  %422 = vadd.xlane.f32.xlu0 %v421
  %v423 = vpop.xlane.xlu0 %422
  %v424 = vmul.f32 %v323, %v241
  %v425 = vmul.f32 %v327, %v241
  %v426 = vmul.f32 %v331, %v241
  %v427 = vmul.f32 %v335, %v241
  %v428 = vmul.f32 %v339, %v241
  %v429 = vmul.f32 %v343, %v241
  %v430 = vmul.f32 %v347, %v241
  %v431 = vmul.f32 %v351, %v241
  %v432 = vmul.f32 %v355, %v241
  %v433 = vmul.f32 %v359, %v241
  %v434 = vmul.f32 %v363, %v241
  %v435 = vmul.f32 %v367, %v241
  %v436 = vmul.f32 %v371, %v241
  %v437 = vmul.f32 %v375, %v241
  %v438 = vmul.f32 %v379, %v241
  %v439 = vmul.f32 %v383, %v241
  %v440 = vmul.f32 %v387, %v241
  %v441 = vmul.f32 %v391, %v241
  %v442 = vmul.f32 %v395, %v241
  %v443 = vmul.f32 %v399, %v241
  %v444 = vmul.f32 %v403, %v241
  %v445 = vmul.f32 %v407, %v241
  %v446 = vmul.f32 %v411, %v241
  %v447 = vmul.f32 %v415, %v241
  %v448 = vmul.f32 %v419, %v241
  %v449 = vmul.f32 %v423, %v241
  %v450 = vmul.f32 %v242, %v242
  %v451 = vmul.f32 %v243, %v243
  %v452 = vmul.f32 %v244, %v244
  %v453 = vmul.f32 %v245, %v245
  %v454 = vmul.f32 %v246, %v246
  %v455 = vmul.f32 %v247, %v247
  %v456 = vmul.f32 %v248, %v248
  %v457 = vmul.f32 %v249, %v249
  %v458 = vmul.f32 %v250, %v250
  %v459 = vmul.f32 %v251, %v251
  %v460 = vmul.f32 %v252, %v252
  %v461 = vmul.f32 %v253, %v253
  %v462 = vmul.f32 %v254, %v254
  %v463 = vmul.f32 %v255, %v255
  %v464 = vmul.f32 %v256, %v256
  %v465 = vmul.f32 %v257, %v257
  %v466 = vmul.f32 %v258, %v258
  %v467 = vmul.f32 %v259, %v259
  %v468 = vmul.f32 %v260, %v260
  %v469 = vmul.f32 %v261, %v261
  %v470 = vmul.f32 %v262, %v262
  %v471 = vmul.f32 %v263, %v263
  %v472 = vmul.f32 %v264, %v264
  %v473 = vmul.f32 %v265, %v265
  %v474 = vmul.f32 %v266, %v266
  %v475 = vmul.f32 %v267, %v267
  %v476 = vsub.f32 %v424, %v450
  %v477 = vsub.f32 %v425, %v451
  %v478 = vsub.f32 %v426, %v452
  %v479 = vsub.f32 %v427, %v453
  %v480 = vsub.f32 %v428, %v454
  %v481 = vsub.f32 %v429, %v455
  %v482 = vsub.f32 %v430, %v456
  %v483 = vsub.f32 %v431, %v457
  %v484 = vsub.f32 %v432, %v458
  %v485 = vsub.f32 %v433, %v459
  %v486 = vsub.f32 %v434, %v460
  %v487 = vsub.f32 %v435, %v461
  %v488 = vsub.f32 %v436, %v462
  %v489 = vsub.f32 %v437, %v463
  %v490 = vsub.f32 %v438, %v464
  %v491 = vsub.f32 %v439, %v465
  %v492 = vsub.f32 %v440, %v466
  %v493 = vsub.f32 %v441, %v467
  %v494 = vsub.f32 %v442, %v468
  %v495 = vsub.f32 %v443, %v469
  %v496 = vsub.f32 %v444, %v470
  %v497 = vsub.f32 %v445, %v471
  %v498 = vsub.f32 %v446, %v472
  %v499 = vsub.f32 %v447, %v473
  %v500 = vsub.f32 %v448, %v474
  %v501 = vsub.f32 %v449, %v475
  %v502 = vmax.f32 %v476, 0.0
  %v503 = vmax.f32 %v477, 0.0
  %v504 = vmax.f32 %v478, 0.0
  %v505 = vmax.f32 %v479, 0.0
  %v506 = vmax.f32 %v480, 0.0
  %v507 = vmax.f32 %v481, 0.0
  %v508 = vmax.f32 %v482, 0.0
  %v509 = vmax.f32 %v483, 0.0
  %v510 = vmax.f32 %v484, 0.0
  %v511 = vmax.f32 %v485, 0.0
  %v512 = vmax.f32 %v486, 0.0
  %v513 = vmax.f32 %v487, 0.0
  %v514 = vmax.f32 %v488, 0.0
  %v515 = vmax.f32 %v489, 0.0
  %v516 = vmax.f32 %v490, 0.0
  %v517 = vmax.f32 %v491, 0.0
  %v518 = vmax.f32 %v492, 0.0
  %v519 = vmax.f32 %v493, 0.0
  %v520 = vmax.f32 %v494, 0.0
  %v521 = vmax.f32 %v495, 0.0
  %v522 = vmax.f32 %v496, 0.0
  %v523 = vmax.f32 %v497, 0.0
  %v524 = vmax.f32 %v498, 0.0
  %v525 = vmax.f32 %v499, 0.0
  %v526 = vmax.f32 %v500, 0.0
  %v527 = vmax.f32 %v501, 0.0
  %v528 = vld [vmem:[%s2] sm:$0xff]
  %v529 = vld [vmem:[%s2 + $0x8] sm:$0xff]
  %v530 = vld [vmem:[%s2 + $0x10] sm:$0xff]
  %v531 = vld [vmem:[%s2 + $0x18] sm:$0xff]
  %v532 = vld [vmem:[%s2 + $0x20] sm:$0xff]
  %v533 = vld [vmem:[%s2 + $0x28] sm:$0xff]
  %v534 = vld [vmem:[%s2 + $0x30] sm:$0xff]
  %v535 = vld [vmem:[%s2 + $0x38] sm:$0xff]
  %v536 = vld [vmem:[%s2 + $0x40] sm:$0xff]
  %v537 = vld [vmem:[%s2 + $0x48] sm:$0xff]
  %v538 = vld [vmem:[%s2 + $0x50] sm:$0xff]
  %v539 = vld [vmem:[%s2 + $0x58] sm:$0xff]
  %v540 = vld [vmem:[%s2 + $0x60] sm:$0xff]
  %v541 = vld [vmem:[%s2 + $0x68] sm:$0xff]
  %v542 = vld [vmem:[%s2 + $0x70] sm:$0xff]
  %v543 = vld [vmem:[%s2 + $0x78] sm:$0xff]
  %v544 = vld [vmem:[%s2 + $0x80] sm:$0xff]
  %v545 = vld [vmem:[%s2 + $0x88] sm:$0xff]
  %v546 = vld [vmem:[%s2 + $0x90] sm:$0xff]
  %v547 = vld [vmem:[%s2 + $0x98] sm:$0xff]
  %v548 = vld [vmem:[%s2 + $0xa0] sm:$0xff]
  %v549 = vld [vmem:[%s2 + $0xa8] sm:$0xff]
  %v550 = vld [vmem:[%s2 + $0xb0] sm:$0xff]
  %v551 = vld [vmem:[%s2 + $0xb8] sm:$0xff]
  %v552 = vld [vmem:[%s2 + $0xc0] sm:$0xff]
  %v553 = vld [vmem:[%s2 + $0xc8] sm:$0xff]
  %v554 = vadd.f32 %v502, 1e-05
  %v555 = vadd.f32 %v503, 1e-05
  %v556 = vadd.f32 %v504, 1e-05
  %v557 = vadd.f32 %v505, 1e-05
  %v558 = vadd.f32 %v506, 1e-05
  %v559 = vadd.f32 %v507, 1e-05
  %v560 = vadd.f32 %v508, 1e-05
  %v561 = vadd.f32 %v509, 1e-05
  %v562 = vadd.f32 %v510, 1e-05
  %v563 = vadd.f32 %v511, 1e-05
  %v564 = vadd.f32 %v512, 1e-05
  %v565 = vadd.f32 %v513, 1e-05
  %v566 = vadd.f32 %v514, 1e-05
  %v567 = vadd.f32 %v515, 1e-05
  %v568 = vadd.f32 %v516, 1e-05
  %v569 = vadd.f32 %v517, 1e-05
  %v570 = vadd.f32 %v518, 1e-05
  %v571 = vadd.f32 %v519, 1e-05
  %v572 = vadd.f32 %v520, 1e-05
  %v573 = vadd.f32 %v521, 1e-05
  %v574 = vadd.f32 %v522, 1e-05
  %v575 = vadd.f32 %v523, 1e-05
  %v576 = vadd.f32 %v524, 1e-05
  %v577 = vadd.f32 %v525, 1e-05
  %v578 = vadd.f32 %v526, 1e-05
  %v579 = vadd.f32 %v527, 1e-05
  %v580 = vrsqrt.pop %v554
  %v581 = vmul.f32 %v580, %v554
  %v582 = vmul.f32 %v581, %v580
  %v583 = vmul.f32 0.5, %v582
  %v584 = vsub.f32 1.5, %v583
  %v585 = vmul.f32 %v580, %v584
  %vm586 = vweird.f32 %v554
  %vm587 = vweird.f32 %v580
  %vm588 = vmor %vm586, %vm587
  %v589 = vsel %vm588, %v580, %v585
  %v590 = vrsqrt.pop %v555
  %v591 = vmul.f32 %v590, %v555
  %v592 = vmul.f32 %v591, %v590
  %v593 = vmul.f32 0.5, %v592
  %v594 = vsub.f32 1.5, %v593
  %v595 = vmul.f32 %v590, %v594
  %vm596 = vweird.f32 %v555
  %vm597 = vweird.f32 %v590
  %vm598 = vmor %vm596, %vm597
  %v599 = vsel %vm598, %v590, %v595
  %v600 = vrsqrt.pop %v556
  %v601 = vmul.f32 %v600, %v556
  %v602 = vmul.f32 %v601, %v600
  %v603 = vmul.f32 0.5, %v602
  %v604 = vsub.f32 1.5, %v603
  %v605 = vmul.f32 %v600, %v604
  %vm606 = vweird.f32 %v556
  %vm607 = vweird.f32 %v600
  %vm608 = vmor %vm606, %vm607
  %v609 = vsel %vm608, %v600, %v605
  %v610 = vrsqrt.pop %v557
  %v611 = vmul.f32 %v610, %v557
  %v612 = vmul.f32 %v611, %v610
  %v613 = vmul.f32 0.5, %v612
  %v614 = vsub.f32 1.5, %v613
  %v615 = vmul.f32 %v610, %v614
  %vm616 = vweird.f32 %v557
  %vm617 = vweird.f32 %v610
  %vm618 = vmor %vm616, %vm617
  %v619 = vsel %vm618, %v610, %v615
  %v620 = vrsqrt.pop %v558
  %v621 = vmul.f32 %v620, %v558
  %v622 = vmul.f32 %v621, %v620
  %v623 = vmul.f32 0.5, %v622
  %v624 = vsub.f32 1.5, %v623
  %v625 = vmul.f32 %v620, %v624
  %vm626 = vweird.f32 %v558
  %vm627 = vweird.f32 %v620
  %vm628 = vmor %vm626, %vm627
  %v629 = vsel %vm628, %v620, %v625
  %v630 = vrsqrt.pop %v559
  %v631 = vmul.f32 %v630, %v559
  %v632 = vmul.f32 %v631, %v630
  %v633 = vmul.f32 0.5, %v632
  %v634 = vsub.f32 1.5, %v633
  %v635 = vmul.f32 %v630, %v634
  %vm636 = vweird.f32 %v559
  %vm637 = vweird.f32 %v630
  %vm638 = vmor %vm636, %vm637
  %v639 = vsel %vm638, %v630, %v635
  %v640 = vrsqrt.pop %v560
  %v641 = vmul.f32 %v640, %v560
  %v642 = vmul.f32 %v641, %v640
  %v643 = vmul.f32 0.5, %v642
  %v644 = vsub.f32 1.5, %v643
  %v645 = vmul.f32 %v640, %v644
  %vm646 = vweird.f32 %v560
  %vm647 = vweird.f32 %v640
  %vm648 = vmor %vm646, %vm647
  %v649 = vsel %vm648, %v640, %v645
  %v650 = vrsqrt.pop %v561
  %v651 = vmul.f32 %v650, %v561
  %v652 = vmul.f32 %v651, %v650
  %v653 = vmul.f32 0.5, %v652
  %v654 = vsub.f32 1.5, %v653
  %v655 = vmul.f32 %v650, %v654
  %vm656 = vweird.f32 %v561
  %vm657 = vweird.f32 %v650
  %vm658 = vmor %vm656, %vm657
  %v659 = vsel %vm658, %v650, %v655
  %v660 = vrsqrt.pop %v562
  %v661 = vmul.f32 %v660, %v562
  %v662 = vmul.f32 %v661, %v660
  %v663 = vmul.f32 0.5, %v662
  %v664 = vsub.f32 1.5, %v663
  %v665 = vmul.f32 %v660, %v664
  %vm666 = vweird.f32 %v562
  %vm667 = vweird.f32 %v660
  %vm668 = vmor %vm666, %vm667
  %v669 = vsel %vm668, %v660, %v665
  %v670 = vrsqrt.pop %v563
  %v671 = vmul.f32 %v670, %v563
  %v672 = vmul.f32 %v671, %v670
  %v673 = vmul.f32 0.5, %v672
  %v674 = vsub.f32 1.5, %v673
  %v675 = vmul.f32 %v670, %v674
  %vm676 = vweird.f32 %v563
  %vm677 = vweird.f32 %v670
  %vm678 = vmor %vm676, %vm677
  %v679 = vsel %vm678, %v670, %v675
  %v680 = vrsqrt.pop %v564
  %v681 = vmul.f32 %v680, %v564
  %v682 = vmul.f32 %v681, %v680
  %v683 = vmul.f32 0.5, %v682
  %v684 = vsub.f32 1.5, %v683
  %v685 = vmul.f32 %v680, %v684
  %vm686 = vweird.f32 %v564
  %vm687 = vweird.f32 %v680
  %vm688 = vmor %vm686, %vm687
  %v689 = vsel %vm688, %v680, %v685
  %v690 = vrsqrt.pop %v565
  %v691 = vmul.f32 %v690, %v565
  %v692 = vmul.f32 %v691, %v690
  %v693 = vmul.f32 0.5, %v692
  %v694 = vsub.f32 1.5, %v693
  %v695 = vmul.f32 %v690, %v694
  %vm696 = vweird.f32 %v565
  %vm697 = vweird.f32 %v690
  %vm698 = vmor %vm696, %vm697
  %v699 = vsel %vm698, %v690, %v695
  %v700 = vrsqrt.pop %v566
  %v701 = vmul.f32 %v700, %v566
  %v702 = vmul.f32 %v701, %v700
  %v703 = vmul.f32 0.5, %v702
  %v704 = vsub.f32 1.5, %v703
  %v705 = vmul.f32 %v700, %v704
  %vm706 = vweird.f32 %v566
  %vm707 = vweird.f32 %v700
  %vm708 = vmor %vm706, %vm707
  %v709 = vsel %vm708, %v700, %v705
  %v710 = vrsqrt.pop %v567
  %v711 = vmul.f32 %v710, %v567
  %v712 = vmul.f32 %v711, %v710
  %v713 = vmul.f32 0.5, %v712
  %v714 = vsub.f32 1.5, %v713
  %v715 = vmul.f32 %v710, %v714
  %vm716 = vweird.f32 %v567
  %vm717 = vweird.f32 %v710
  %vm718 = vmor %vm716, %vm717
  %v719 = vsel %vm718, %v710, %v715
  %v720 = vrsqrt.pop %v568
  %v721 = vmul.f32 %v720, %v568
  %v722 = vmul.f32 %v721, %v720
  %v723 = vmul.f32 0.5, %v722
  %v724 = vsub.f32 1.5, %v723
  %v725 = vmul.f32 %v720, %v724
  %vm726 = vweird.f32 %v568
  %vm727 = vweird.f32 %v720
  %vm728 = vmor %vm726, %vm727
  %v729 = vsel %vm728, %v720, %v725
  %v730 = vrsqrt.pop %v569
  %v731 = vmul.f32 %v730, %v569
  %v732 = vmul.f32 %v731, %v730
  %v733 = vmul.f32 0.5, %v732
  %v734 = vsub.f32 1.5, %v733
  %v735 = vmul.f32 %v730, %v734
  %vm736 = vweird.f32 %v569
  %vm737 = vweird.f32 %v730
  %vm738 = vmor %vm736, %vm737
  %v739 = vsel %vm738, %v730, %v735
  %v740 = vrsqrt.pop %v570
  %v741 = vmul.f32 %v740, %v570
  %v742 = vmul.f32 %v741, %v740
  %v743 = vmul.f32 0.5, %v742
  %v744 = vsub.f32 1.5, %v743
  %v745 = vmul.f32 %v740, %v744
  %vm746 = vweird.f32 %v570
  %vm747 = vweird.f32 %v740
  %vm748 = vmor %vm746, %vm747
  %v749 = vsel %vm748, %v740, %v745
  %v750 = vrsqrt.pop %v571
  %v751 = vmul.f32 %v750, %v571
  %v752 = vmul.f32 %v751, %v750
  %v753 = vmul.f32 0.5, %v752
  %v754 = vsub.f32 1.5, %v753
  %v755 = vmul.f32 %v750, %v754
  %vm756 = vweird.f32 %v571
  %vm757 = vweird.f32 %v750
  %vm758 = vmor %vm756, %vm757
  %v759 = vsel %vm758, %v750, %v755
  %v760 = vrsqrt.pop %v572
  %v761 = vmul.f32 %v760, %v572
  %v762 = vmul.f32 %v761, %v760
  %v763 = vmul.f32 0.5, %v762
  %v764 = vsub.f32 1.5, %v763
  %v765 = vmul.f32 %v760, %v764
  %vm766 = vweird.f32 %v572
  %vm767 = vweird.f32 %v760
  %vm768 = vmor %vm766, %vm767
  %v769 = vsel %vm768, %v760, %v765
  %v770 = vrsqrt.pop %v573
  %v771 = vmul.f32 %v770, %v573
  %v772 = vmul.f32 %v771, %v770
  %v773 = vmul.f32 0.5, %v772
  %v774 = vsub.f32 1.5, %v773
  %v775 = vmul.f32 %v770, %v774
  %vm776 = vweird.f32 %v573
  %vm777 = vweird.f32 %v770
  %vm778 = vmor %vm776, %vm777
  %v779 = vsel %vm778, %v770, %v775
  %v780 = vrsqrt.pop %v574
  %v781 = vmul.f32 %v780, %v574
  %v782 = vmul.f32 %v781, %v780
  %v783 = vmul.f32 0.5, %v782
  %v784 = vsub.f32 1.5, %v783
  %v785 = vmul.f32 %v780, %v784
  %vm786 = vweird.f32 %v574
  %vm787 = vweird.f32 %v780
  %vm788 = vmor %vm786, %vm787
  %v789 = vsel %vm788, %v780, %v785
  %v790 = vrsqrt.pop %v575
  %v791 = vmul.f32 %v790, %v575
  %v792 = vmul.f32 %v791, %v790
  %v793 = vmul.f32 0.5, %v792
  %v794 = vsub.f32 1.5, %v793
  %v795 = vmul.f32 %v790, %v794
  %vm796 = vweird.f32 %v575
  %vm797 = vweird.f32 %v790
  %vm798 = vmor %vm796, %vm797
  %v799 = vsel %vm798, %v790, %v795
  %v800 = vrsqrt.pop %v576
  %v801 = vmul.f32 %v800, %v576
  %v802 = vmul.f32 %v801, %v800
  %v803 = vmul.f32 0.5, %v802
  %v804 = vsub.f32 1.5, %v803
  %v805 = vmul.f32 %v800, %v804
  %vm806 = vweird.f32 %v576
  %vm807 = vweird.f32 %v800
  %vm808 = vmor %vm806, %vm807
  %v809 = vsel %vm808, %v800, %v805
  %v810 = vrsqrt.pop %v577
  %v811 = vmul.f32 %v810, %v577
  %v812 = vmul.f32 %v811, %v810
  %v813 = vmul.f32 0.5, %v812
  %v814 = vsub.f32 1.5, %v813
  %v815 = vmul.f32 %v810, %v814
  %vm816 = vweird.f32 %v577
  %vm817 = vweird.f32 %v810
  %vm818 = vmor %vm816, %vm817
  %v819 = vsel %vm818, %v810, %v815
  %v820 = vrsqrt.pop %v578
  %v821 = vmul.f32 %v820, %v578
  %v822 = vmul.f32 %v821, %v820
  %v823 = vmul.f32 0.5, %v822
  %v824 = vsub.f32 1.5, %v823
  %v825 = vmul.f32 %v820, %v824
  %vm826 = vweird.f32 %v578
  %vm827 = vweird.f32 %v820
  %vm828 = vmor %vm826, %vm827
  %v829 = vsel %vm828, %v820, %v825
  %v830 = vrsqrt.pop %v579
  %v831 = vmul.f32 %v830, %v579
  %v832 = vmul.f32 %v831, %v830
  %v833 = vmul.f32 0.5, %v832
  %v834 = vsub.f32 1.5, %v833
  %v835 = vmul.f32 %v830, %v834
  %vm836 = vweird.f32 %v579
  %vm837 = vweird.f32 %v830
  %vm838 = vmor %vm836, %vm837
  %v839 = vsel %vm838, %v830, %v835
  %v840 = vmul.f32 %v528, %v589
  %v841 = vmul.f32 %v529, %v599
  %v842 = vmul.f32 %v530, %v609
  %v843 = vmul.f32 %v531, %v619
  %v844 = vmul.f32 %v532, %v629
  %v845 = vmul.f32 %v533, %v639
  %v846 = vmul.f32 %v534, %v649
  %v847 = vmul.f32 %v535, %v659
  %v848 = vmul.f32 %v536, %v669
  %v849 = vmul.f32 %v537, %v679
  %v850 = vmul.f32 %v538, %v689
  %v851 = vmul.f32 %v539, %v699
  %v852 = vmul.f32 %v540, %v709
  %v853 = vmul.f32 %v541, %v719
  %v854 = vmul.f32 %v542, %v729
  %v855 = vmul.f32 %v543, %v739
  %v856 = vmul.f32 %v544, %v749
  %v857 = vmul.f32 %v545, %v759
  %v858 = vmul.f32 %v546, %v769
  %v859 = vmul.f32 %v547, %v779
  %v860 = vmul.f32 %v548, %v789
  %v861 = vmul.f32 %v549, %v799
  %v862 = vmul.f32 %v550, %v809
  %v863 = vmul.f32 %v551, %v819
  %v864 = vmul.f32 %v552, %v829
  %v865 = vmul.f32 %v553, %v839
  %v866 = vld [vmem:[%s3] sm:$0xff]
  %v867 = vld [vmem:[%s3 + $0x8] sm:$0xff]
  %v868 = vld [vmem:[%s3 + $0x10] sm:$0xff]
  %v869 = vld [vmem:[%s3 + $0x18] sm:$0xff]
  %v870 = vld [vmem:[%s3 + $0x20] sm:$0xff]
  %v871 = vld [vmem:[%s3 + $0x28] sm:$0xff]
  %v872 = vld [vmem:[%s3 + $0x30] sm:$0xff]
  %v873 = vld [vmem:[%s3 + $0x38] sm:$0xff]
  %v874 = vld [vmem:[%s3 + $0x40] sm:$0xff]
  %v875 = vld [vmem:[%s3 + $0x48] sm:$0xff]
  %v876 = vld [vmem:[%s3 + $0x50] sm:$0xff]
  %v877 = vld [vmem:[%s3 + $0x58] sm:$0xff]
  %v878 = vld [vmem:[%s3 + $0x60] sm:$0xff]
  %v879 = vld [vmem:[%s3 + $0x68] sm:$0xff]
  %v880 = vld [vmem:[%s3 + $0x70] sm:$0xff]
  %v881 = vld [vmem:[%s3 + $0x78] sm:$0xff]
  %v882 = vld [vmem:[%s3 + $0x80] sm:$0xff]
  %v883 = vld [vmem:[%s3 + $0x88] sm:$0xff]
  %v884 = vld [vmem:[%s3 + $0x90] sm:$0xff]
  %v885 = vld [vmem:[%s3 + $0x98] sm:$0xff]
  %v886 = vld [vmem:[%s3 + $0xa0] sm:$0xff]
  %v887 = vld [vmem:[%s3 + $0xa8] sm:$0xff]
  %v888 = vld [vmem:[%s3 + $0xb0] sm:$0xff]
  %v889 = vld [vmem:[%s3 + $0xb8] sm:$0xff]
  %v890 = vld [vmem:[%s3 + $0xc0] sm:$0xff]
  %v891 = vld [vmem:[%s3 + $0xc8] sm:$0xff]
  %v892 = vmul.f32 %v242, %v840
  %v893 = vmul.f32 %v243, %v841
  %v894 = vmul.f32 %v244, %v842
  %v895 = vmul.f32 %v245, %v843
  %v896 = vmul.f32 %v246, %v844
  %v897 = vmul.f32 %v247, %v845
  %v898 = vmul.f32 %v248, %v846
  %v899 = vmul.f32 %v249, %v847
  %v900 = vmul.f32 %v250, %v848
  %v901 = vmul.f32 %v251, %v849
  %v902 = vmul.f32 %v252, %v850
  %v903 = vmul.f32 %v253, %v851
  %v904 = vmul.f32 %v254, %v852
  %v905 = vmul.f32 %v255, %v853
  %v906 = vmul.f32 %v256, %v854
  %v907 = vmul.f32 %v257, %v855
  %v908 = vmul.f32 %v258, %v856
  %v909 = vmul.f32 %v259, %v857
  %v910 = vmul.f32 %v260, %v858
  %v911 = vmul.f32 %v261, %v859
  %v912 = vmul.f32 %v262, %v860
  %v913 = vmul.f32 %v263, %v861
  %v914 = vmul.f32 %v264, %v862
  %v915 = vmul.f32 %v265, %v863
  %v916 = vmul.f32 %v266, %v864
  %v917 = vmul.f32 %v267, %v865
  %v918 = vsub.f32 %v866, %v892
  %v919 = vsub.f32 %v867, %v893
  %v920 = vsub.f32 %v868, %v894
  %v921 = vsub.f32 %v869, %v895
  %v922 = vsub.f32 %v870, %v896
  %v923 = vsub.f32 %v871, %v897
  %v924 = vsub.f32 %v872, %v898
  %v925 = vsub.f32 %v873, %v899
  %v926 = vsub.f32 %v874, %v900
  %v927 = vsub.f32 %v875, %v901
  %v928 = vsub.f32 %v876, %v902
  %v929 = vsub.f32 %v877, %v903
  %v930 = vsub.f32 %v878, %v904
  %v931 = vsub.f32 %v879, %v905
  %v932 = vsub.f32 %v880, %v906
  %v933 = vsub.f32 %v881, %v907
  %v934 = vsub.f32 %v882, %v908
  %v935 = vsub.f32 %v883, %v909
  %v936 = vsub.f32 %v884, %v910
  %v937 = vsub.f32 %v885, %v911
  %v938 = vsub.f32 %v886, %v912
  %v939 = vsub.f32 %v887, %v913
  %v940 = vsub.f32 %v888, %v914
  %v941 = vsub.f32 %v889, %v915
  %v942 = vsub.f32 %v890, %v916
  %v943 = vsub.f32 %v891, %v917
  %945 = vset.pattern.permute.xlu0 0
  %946 = vperm.xlu0 %945, %v840
  %v947 = vpop.permute.xlu0 %946
  %950 = vset.pattern.permute.xlu0 0
  %951 = vperm.xlu0 %950, %v841
  %v952 = vpop.permute.xlu0 %951
  %955 = vset.pattern.permute.xlu0 0
  %956 = vperm.xlu0 %955, %v842
  %v957 = vpop.permute.xlu0 %956
  %960 = vset.pattern.permute.xlu0 0
  %961 = vperm.xlu0 %960, %v843
  %v962 = vpop.permute.xlu0 %961
  %965 = vset.pattern.permute.xlu0 0
  %966 = vperm.xlu0 %965, %v844
  %v967 = vpop.permute.xlu0 %966
  %970 = vset.pattern.permute.xlu0 0
  %971 = vperm.xlu0 %970, %v845
  %v972 = vpop.permute.xlu0 %971
  %975 = vset.pattern.permute.xlu0 0
  %976 = vperm.xlu0 %975, %v846
  %v977 = vpop.permute.xlu0 %976
  %980 = vset.pattern.permute.xlu0 0
  %981 = vperm.xlu0 %980, %v847
  %v982 = vpop.permute.xlu0 %981
  %985 = vset.pattern.permute.xlu0 0
  %986 = vperm.xlu0 %985, %v848
  %v987 = vpop.permute.xlu0 %986
  %990 = vset.pattern.permute.xlu0 0
  %991 = vperm.xlu0 %990, %v849
  %v992 = vpop.permute.xlu0 %991
  %995 = vset.pattern.permute.xlu0 0
  %996 = vperm.xlu0 %995, %v850
  %v997 = vpop.permute.xlu0 %996
  %1000 = vset.pattern.permute.xlu0 0
  %1001 = vperm.xlu0 %1000, %v851
  %v1002 = vpop.permute.xlu0 %1001
  %1005 = vset.pattern.permute.xlu0 0
  %1006 = vperm.xlu0 %1005, %v852
  %v1007 = vpop.permute.xlu0 %1006
  %1010 = vset.pattern.permute.xlu0 0
  %1011 = vperm.xlu0 %1010, %v853
  %v1012 = vpop.permute.xlu0 %1011
  %1015 = vset.pattern.permute.xlu0 0
  %1016 = vperm.xlu0 %1015, %v854
  %v1017 = vpop.permute.xlu0 %1016
  %1020 = vset.pattern.permute.xlu0 0
  %1021 = vperm.xlu0 %1020, %v855
  %v1022 = vpop.permute.xlu0 %1021
  %1025 = vset.pattern.permute.xlu0 0
  %1026 = vperm.xlu0 %1025, %v856
  %v1027 = vpop.permute.xlu0 %1026
  %1030 = vset.pattern.permute.xlu0 0
  %1031 = vperm.xlu0 %1030, %v857
  %v1032 = vpop.permute.xlu0 %1031
  %1035 = vset.pattern.permute.xlu0 0
  %1036 = vperm.xlu0 %1035, %v858
  %v1037 = vpop.permute.xlu0 %1036
  %1040 = vset.pattern.permute.xlu0 0
  %1041 = vperm.xlu0 %1040, %v859
  %v1042 = vpop.permute.xlu0 %1041
  %1045 = vset.pattern.permute.xlu0 0
  %1046 = vperm.xlu0 %1045, %v860
  %v1047 = vpop.permute.xlu0 %1046
  %1050 = vset.pattern.permute.xlu0 0
  %1051 = vperm.xlu0 %1050, %v861
  %v1052 = vpop.permute.xlu0 %1051
  %1055 = vset.pattern.permute.xlu0 0
  %1056 = vperm.xlu0 %1055, %v862
  %v1057 = vpop.permute.xlu0 %1056
  %1060 = vset.pattern.permute.xlu0 0
  %1061 = vperm.xlu0 %1060, %v863
  %v1062 = vpop.permute.xlu0 %1061
  %1065 = vset.pattern.permute.xlu0 0
  %1066 = vperm.xlu0 %1065, %v864
  %v1067 = vpop.permute.xlu0 %1066
  %1070 = vset.pattern.permute.xlu0 0
  %1071 = vperm.xlu0 %1070, %v865
  %v1072 = vpop.permute.xlu0 %1071
  %v1074 = vmul.f32 %v26, %v947
  %v1075 = vmul.f32 %v27, %v947
  %v1076 = vmul.f32 %v28, %v952
  %v1077 = vmul.f32 %v29, %v952
  %v1078 = vmul.f32 %v30, %v957
  %v1079 = vmul.f32 %v31, %v957
  %v1080 = vmul.f32 %v32, %v962
  %v1081 = vmul.f32 %v33, %v962
  %v1082 = vmul.f32 %v34, %v967
  %v1083 = vmul.f32 %v35, %v967
  %v1084 = vmul.f32 %v36, %v972
  %v1085 = vmul.f32 %v37, %v972
  %v1086 = vmul.f32 %v38, %v977
  %v1087 = vmul.f32 %v39, %v977
  %v1088 = vmul.f32 %v40, %v982
  %v1089 = vmul.f32 %v41, %v982
  %v1090 = vmul.f32 %v42, %v987
  %v1091 = vmul.f32 %v43, %v987
  %v1092 = vmul.f32 %v44, %v992
  %v1093 = vmul.f32 %v45, %v992
  %v1094 = vmul.f32 %v46, %v997
  %v1095 = vmul.f32 %v47, %v997
  %v1096 = vmul.f32 %v48, %v1002
  %v1097 = vmul.f32 %v49, %v1002
  %v1098 = vmul.f32 %v50, %v1007
  %v1099 = vmul.f32 %v51, %v1007
  %v1100 = vmul.f32 %v52, %v1012
  %v1101 = vmul.f32 %v53, %v1012
  %v1102 = vmul.f32 %v54, %v1017
  %v1103 = vmul.f32 %v55, %v1017
  %v1104 = vmul.f32 %v56, %v1022
  %v1105 = vmul.f32 %v57, %v1022
  %v1106 = vmul.f32 %v58, %v1027
  %v1107 = vmul.f32 %v59, %v1027
  %v1108 = vmul.f32 %v60, %v1032
  %v1109 = vmul.f32 %v61, %v1032
  %v1110 = vmul.f32 %v62, %v1037
  %v1111 = vmul.f32 %v63, %v1037
  %v1112 = vmul.f32 %v64, %v1042
  %v1113 = vmul.f32 %v65, %v1042
  %v1114 = vmul.f32 %v66, %v1047
  %v1115 = vmul.f32 %v67, %v1047
  %v1116 = vmul.f32 %v68, %v1052
  %v1117 = vmul.f32 %v69, %v1052
  %v1118 = vmul.f32 %v70, %v1057
  %v1119 = vmul.f32 %v71, %v1057
  %v1120 = vmul.f32 %v72, %v1062
  %v1121 = vmul.f32 %v73, %v1062
  %v1122 = vmul.f32 %v74, %v1067
  %v1123 = vmul.f32 %v75, %v1067
  %v1124 = vmul.f32 %v76, %v1072
  %v1125 = vmul.f32 %v77, %v1072
  %1127 = vset.pattern.permute.xlu0 0
  %1128 = vperm.xlu0 %1127, %v918
  %v1129 = vpop.permute.xlu0 %1128
  %1132 = vset.pattern.permute.xlu0 0
  %1133 = vperm.xlu0 %1132, %v919
  %v1134 = vpop.permute.xlu0 %1133
  %1137 = vset.pattern.permute.xlu0 0
  %1138 = vperm.xlu0 %1137, %v920
  %v1139 = vpop.permute.xlu0 %1138
  %1142 = vset.pattern.permute.xlu0 0
  %1143 = vperm.xlu0 %1142, %v921
  %v1144 = vpop.permute.xlu0 %1143
  %1147 = vset.pattern.permute.xlu0 0
  %1148 = vperm.xlu0 %1147, %v922
  %v1149 = vpop.permute.xlu0 %1148
  %1152 = vset.pattern.permute.xlu0 0
  %1153 = vperm.xlu0 %1152, %v923
  %v1154 = vpop.permute.xlu0 %1153
  %1157 = vset.pattern.permute.xlu0 0
  %1158 = vperm.xlu0 %1157, %v924
  %v1159 = vpop.permute.xlu0 %1158
  %1162 = vset.pattern.permute.xlu0 0
  %1163 = vperm.xlu0 %1162, %v925
  %v1164 = vpop.permute.xlu0 %1163
  %1167 = vset.pattern.permute.xlu0 0
  %1168 = vperm.xlu0 %1167, %v926
  %v1169 = vpop.permute.xlu0 %1168
  %1172 = vset.pattern.permute.xlu0 0
  %1173 = vperm.xlu0 %1172, %v927
  %v1174 = vpop.permute.xlu0 %1173
  %1177 = vset.pattern.permute.xlu0 0
  %1178 = vperm.xlu0 %1177, %v928
  %v1179 = vpop.permute.xlu0 %1178
  %1182 = vset.pattern.permute.xlu0 0
  %1183 = vperm.xlu0 %1182, %v929
  %v1184 = vpop.permute.xlu0 %1183
  %1187 = vset.pattern.permute.xlu0 0
  %1188 = vperm.xlu0 %1187, %v930
  %v1189 = vpop.permute.xlu0 %1188
  %1192 = vset.pattern.permute.xlu0 0
  %1193 = vperm.xlu0 %1192, %v931
  %v1194 = vpop.permute.xlu0 %1193
  %1197 = vset.pattern.permute.xlu0 0
  %1198 = vperm.xlu0 %1197, %v932
  %v1199 = vpop.permute.xlu0 %1198
  %1202 = vset.pattern.permute.xlu0 0
  %1203 = vperm.xlu0 %1202, %v933
  %v1204 = vpop.permute.xlu0 %1203
  %1207 = vset.pattern.permute.xlu0 0
  %1208 = vperm.xlu0 %1207, %v934
  %v1209 = vpop.permute.xlu0 %1208
  %1212 = vset.pattern.permute.xlu0 0
  %1213 = vperm.xlu0 %1212, %v935
  %v1214 = vpop.permute.xlu0 %1213
  %1217 = vset.pattern.permute.xlu0 0
  %1218 = vperm.xlu0 %1217, %v936
  %v1219 = vpop.permute.xlu0 %1218
  %1222 = vset.pattern.permute.xlu0 0
  %1223 = vperm.xlu0 %1222, %v937
  %v1224 = vpop.permute.xlu0 %1223
  %1227 = vset.pattern.permute.xlu0 0
  %1228 = vperm.xlu0 %1227, %v938
  %v1229 = vpop.permute.xlu0 %1228
  %1232 = vset.pattern.permute.xlu0 0
  %1233 = vperm.xlu0 %1232, %v939
  %v1234 = vpop.permute.xlu0 %1233
  %1237 = vset.pattern.permute.xlu0 0
  %1238 = vperm.xlu0 %1237, %v940
  %v1239 = vpop.permute.xlu0 %1238
  %1242 = vset.pattern.permute.xlu0 0
  %1243 = vperm.xlu0 %1242, %v941
  %v1244 = vpop.permute.xlu0 %1243
  %1247 = vset.pattern.permute.xlu0 0
  %1248 = vperm.xlu0 %1247, %v942
  %v1249 = vpop.permute.xlu0 %1248
  %1252 = vset.pattern.permute.xlu0 0
  %1253 = vperm.xlu0 %1252, %v943
  %v1254 = vpop.permute.xlu0 %1253
  %v1256 = vadd.f32 %v1074, %v1129
  %v1257 = vadd.f32 %v1075, %v1129
  %v1258 = vadd.f32 %v1076, %v1134
  %v1259 = vadd.f32 %v1077, %v1134
  %v1260 = vadd.f32 %v1078, %v1139
  %v1261 = vadd.f32 %v1079, %v1139
  %v1262 = vadd.f32 %v1080, %v1144
  %v1263 = vadd.f32 %v1081, %v1144
  %v1264 = vadd.f32 %v1082, %v1149
  %v1265 = vadd.f32 %v1083, %v1149
  %v1266 = vadd.f32 %v1084, %v1154
  %v1267 = vadd.f32 %v1085, %v1154
  %v1268 = vadd.f32 %v1086, %v1159
  %v1269 = vadd.f32 %v1087, %v1159
  %v1270 = vadd.f32 %v1088, %v1164
  %v1271 = vadd.f32 %v1089, %v1164
  %v1272 = vadd.f32 %v1090, %v1169
  %v1273 = vadd.f32 %v1091, %v1169
  %v1274 = vadd.f32 %v1092, %v1174
  %v1275 = vadd.f32 %v1093, %v1174
  %v1276 = vadd.f32 %v1094, %v1179
  %v1277 = vadd.f32 %v1095, %v1179
  %v1278 = vadd.f32 %v1096, %v1184
  %v1279 = vadd.f32 %v1097, %v1184
  %v1280 = vadd.f32 %v1098, %v1189
  %v1281 = vadd.f32 %v1099, %v1189
  %v1282 = vadd.f32 %v1100, %v1194
  %v1283 = vadd.f32 %v1101, %v1194
  %v1284 = vadd.f32 %v1102, %v1199
  %v1285 = vadd.f32 %v1103, %v1199
  %v1286 = vadd.f32 %v1104, %v1204
  %v1287 = vadd.f32 %v1105, %v1204
  %v1288 = vadd.f32 %v1106, %v1209
  %v1289 = vadd.f32 %v1107, %v1209
  %v1290 = vadd.f32 %v1108, %v1214
  %v1291 = vadd.f32 %v1109, %v1214
  %v1292 = vadd.f32 %v1110, %v1219
  %v1293 = vadd.f32 %v1111, %v1219
  %v1294 = vadd.f32 %v1112, %v1224
  %v1295 = vadd.f32 %v1113, %v1224
  %v1296 = vadd.f32 %v1114, %v1229
  %v1297 = vadd.f32 %v1115, %v1229
  %v1298 = vadd.f32 %v1116, %v1234
  %v1299 = vadd.f32 %v1117, %v1234
  %v1300 = vadd.f32 %v1118, %v1239
  %v1301 = vadd.f32 %v1119, %v1239
  %v1302 = vadd.f32 %v1120, %v1244
  %v1303 = vadd.f32 %v1121, %v1244
  %v1304 = vadd.f32 %v1122, %v1249
  %v1305 = vadd.f32 %v1123, %v1249
  %v1306 = vadd.f32 %v1124, %v1254
  %v1307 = vadd.f32 %v1125, %v1254
  %v1308 = vadd.f32 %v1256, %v78
  %v1309 = vadd.f32 %v1257, %v79
  %v1310 = vadd.f32 %v1258, %v80
  %v1311 = vadd.f32 %v1259, %v81
  %v1312 = vadd.f32 %v1260, %v82
  %v1313 = vadd.f32 %v1261, %v83
  %v1314 = vadd.f32 %v1262, %v84
  %v1315 = vadd.f32 %v1263, %v85
  %v1316 = vadd.f32 %v1264, %v86
  %v1317 = vadd.f32 %v1265, %v87
  %v1318 = vadd.f32 %v1266, %v88
  %v1319 = vadd.f32 %v1267, %v89
  %v1320 = vadd.f32 %v1268, %v90
  %v1321 = vadd.f32 %v1269, %v91
  %v1322 = vadd.f32 %v1270, %v92
  %v1323 = vadd.f32 %v1271, %v93
  %v1324 = vadd.f32 %v1272, %v94
  %v1325 = vadd.f32 %v1273, %v95
  %v1326 = vadd.f32 %v1274, %v96
  %v1327 = vadd.f32 %v1275, %v97
  %v1328 = vadd.f32 %v1276, %v98
  %v1329 = vadd.f32 %v1277, %v99
  %v1330 = vadd.f32 %v1278, %v100
  %v1331 = vadd.f32 %v1279, %v101
  %v1332 = vadd.f32 %v1280, %v102
  %v1333 = vadd.f32 %v1281, %v103
  %v1334 = vadd.f32 %v1282, %v104
  %v1335 = vadd.f32 %v1283, %v105
  %v1336 = vadd.f32 %v1284, %v106
  %v1337 = vadd.f32 %v1285, %v107
  %v1338 = vadd.f32 %v1286, %v108
  %v1339 = vadd.f32 %v1287, %v109
  %v1340 = vadd.f32 %v1288, %v110
  %v1341 = vadd.f32 %v1289, %v111
  %v1342 = vadd.f32 %v1290, %v112
  %v1343 = vadd.f32 %v1291, %v113
  %v1344 = vadd.f32 %v1292, %v114
  %v1345 = vadd.f32 %v1293, %v115
  %v1346 = vadd.f32 %v1294, %v116
  %v1347 = vadd.f32 %v1295, %v117
  %v1348 = vadd.f32 %v1296, %v118
  %v1349 = vadd.f32 %v1297, %v119
  %v1350 = vadd.f32 %v1298, %v120
  %v1351 = vadd.f32 %v1299, %v121
  %v1352 = vadd.f32 %v1300, %v122
  %v1353 = vadd.f32 %v1301, %v123
  %v1354 = vadd.f32 %v1302, %v124
  %v1355 = vadd.f32 %v1303, %v125
  %v1356 = vadd.f32 %v1304, %v126
  %v1357 = vadd.f32 %v1305, %v127
  %v1358 = vadd.f32 %v1306, %v128
  %v1359 = vadd.f32 %v1307, %v129
  %v1360 = vmax.f32 %v1308, 0.0
  %v1361 = vmax.f32 %v1309, 0.0
  %v1362 = vmax.f32 %v1310, 0.0
  %v1363 = vmax.f32 %v1311, 0.0
  %v1364 = vmax.f32 %v1312, 0.0
  %v1365 = vmax.f32 %v1313, 0.0
  %v1366 = vmax.f32 %v1314, 0.0
  %v1367 = vmax.f32 %v1315, 0.0
  %v1368 = vmax.f32 %v1316, 0.0
  %v1369 = vmax.f32 %v1317, 0.0
  %v1370 = vmax.f32 %v1318, 0.0
  %v1371 = vmax.f32 %v1319, 0.0
  %v1372 = vmax.f32 %v1320, 0.0
  %v1373 = vmax.f32 %v1321, 0.0
  %v1374 = vmax.f32 %v1322, 0.0
  %v1375 = vmax.f32 %v1323, 0.0
  %v1376 = vmax.f32 %v1324, 0.0
  %v1377 = vmax.f32 %v1325, 0.0
  %v1378 = vmax.f32 %v1326, 0.0
  %v1379 = vmax.f32 %v1327, 0.0
  %v1380 = vmax.f32 %v1328, 0.0
  %v1381 = vmax.f32 %v1329, 0.0
  %v1382 = vmax.f32 %v1330, 0.0
  %v1383 = vmax.f32 %v1331, 0.0
  %v1384 = vmax.f32 %v1332, 0.0
  %v1385 = vmax.f32 %v1333, 0.0
  %v1386 = vmax.f32 %v1334, 0.0
  %v1387 = vmax.f32 %v1335, 0.0
  %v1388 = vmax.f32 %v1336, 0.0
  %v1389 = vmax.f32 %v1337, 0.0
  %v1390 = vmax.f32 %v1338, 0.0
  %v1391 = vmax.f32 %v1339, 0.0
  %v1392 = vmax.f32 %v1340, 0.0
  %v1393 = vmax.f32 %v1341, 0.0
  %v1394 = vmax.f32 %v1342, 0.0
  %v1395 = vmax.f32 %v1343, 0.0
  %v1396 = vmax.f32 %v1344, 0.0
  %v1397 = vmax.f32 %v1345, 0.0
  %v1398 = vmax.f32 %v1346, 0.0
  %v1399 = vmax.f32 %v1347, 0.0
  %v1400 = vmax.f32 %v1348, 0.0
  %v1401 = vmax.f32 %v1349, 0.0
  %v1402 = vmax.f32 %v1350, 0.0
  %v1403 = vmax.f32 %v1351, 0.0
  %v1404 = vmax.f32 %v1352, 0.0
  %v1405 = vmax.f32 %v1353, 0.0
  %v1406 = vmax.f32 %v1354, 0.0
  %v1407 = vmax.f32 %v1355, 0.0
  %v1408 = vmax.f32 %v1356, 0.0
  %v1409 = vmax.f32 %v1357, 0.0
  %v1410 = vmax.f32 %v1358, 0.0
  %v1411 = vmax.f32 %v1359, 0.0
  %v1412 = vld [vmem:[%s4] sm:$0xff]
  %v1413 = vld [vmem:[%s4 + $0x8] sm:$0xff]
  %v1414 = vld [vmem:[%s4 + $0x10] sm:$0xff]
  %v1415 = vld [vmem:[%s4 + $0x18] sm:$0xff]
  %v1416 = vld [vmem:[%s4 + $0x20] sm:$0xff]
  %v1417 = vld [vmem:[%s4 + $0x28] sm:$0xff]
  %v1418 = vld [vmem:[%s4 + $0x30] sm:$0xff]
  %v1419 = vld [vmem:[%s4 + $0x38] sm:$0xff]
  %v1420 = vld [vmem:[%s4 + $0x40] sm:$0xff]
  %v1421 = vld [vmem:[%s4 + $0x48] sm:$0xff]
  %v1422 = vld [vmem:[%s4 + $0x50] sm:$0xff]
  %v1423 = vld [vmem:[%s4 + $0x58] sm:$0xff]
  %v1424 = vld [vmem:[%s4 + $0x60] sm:$0xff]
  %v1425 = vld [vmem:[%s4 + $0x68] sm:$0xff]
  %v1426 = vld [vmem:[%s4 + $0x70] sm:$0xff]
  %v1427 = vld [vmem:[%s4 + $0x78] sm:$0xff]
  %v1428 = vld [vmem:[%s4 + $0x80] sm:$0xff]
  %v1429 = vld [vmem:[%s4 + $0x88] sm:$0xff]
  %v1430 = vld [vmem:[%s4 + $0x90] sm:$0xff]
  %v1431 = vld [vmem:[%s4 + $0x98] sm:$0xff]
  %v1432 = vld [vmem:[%s4 + $0xa0] sm:$0xff]
  %v1433 = vld [vmem:[%s4 + $0xa8] sm:$0xff]
  %v1434 = vld [vmem:[%s4 + $0xb0] sm:$0xff]
  %v1435 = vld [vmem:[%s4 + $0xb8] sm:$0xff]
  %v1436 = vld [vmem:[%s4 + $0xc0] sm:$0xff]
  %v1437 = vld [vmem:[%s4 + $0xc8] sm:$0xff]
  %v1438 = vld [vmem:[%s4 + $0xd0] sm:$0xff]
  %v1439 = vld [vmem:[%s4 + $0xd8] sm:$0xff]
  %v1440 = vld [vmem:[%s4 + $0xe0] sm:$0xff]
  %v1441 = vld [vmem:[%s4 + $0xe8] sm:$0xff]
  %v1442 = vld [vmem:[%s4 + $0xf0] sm:$0xff]
  %v1443 = vld [vmem:[%s4 + $0xf8] sm:$0xff]
  %v1444 = vld [vmem:[%s4 + $0x100] sm:$0xff]
  %v1445 = vld [vmem:[%s4 + $0x108] sm:$0xff]
  %v1446 = vld [vmem:[%s4 + $0x110] sm:$0xff]
  %v1447 = vld [vmem:[%s4 + $0x118] sm:$0xff]
  %v1448 = vld [vmem:[%s4 + $0x120] sm:$0xff]
  %v1449 = vld [vmem:[%s4 + $0x128] sm:$0xff]
  %v1450 = vld [vmem:[%s4 + $0x130] sm:$0xff]
  %v1451 = vld [vmem:[%s4 + $0x138] sm:$0xff]
  %v1452 = vld [vmem:[%s4 + $0x140] sm:$0xff]
  %v1453 = vld [vmem:[%s4 + $0x148] sm:$0xff]
  %v1454 = vld [vmem:[%s4 + $0x150] sm:$0xff]
  %v1455 = vld [vmem:[%s4 + $0x158] sm:$0xff]
  %v1456 = vld [vmem:[%s4 + $0x160] sm:$0xff]
  %v1457 = vld [vmem:[%s4 + $0x168] sm:$0xff]
  %v1458 = vld [vmem:[%s4 + $0x170] sm:$0xff]
  %v1459 = vld [vmem:[%s4 + $0x178] sm:$0xff]
  %v1460 = vld [vmem:[%s4 + $0x180] sm:$0xff]
  %v1461 = vld [vmem:[%s4 + $0x188] sm:$0xff]
  %v1462 = vld [vmem:[%s4 + $0x190] sm:$0xff]
  %v1463 = vld [vmem:[%s4 + $0x198] sm:$0xff]
  %vm1464 = vcmask 654336
  %v1466 = vsel %vm1464, %v1413, 0
  %v1469 = vsel %vm1464, %v1415, 0
  %v1472 = vsel %vm1464, %v1417, 0
  %v1475 = vsel %vm1464, %v1419, 0
  %v1478 = vsel %vm1464, %v1421, 0
  %v1481 = vsel %vm1464, %v1423, 0
  %v1484 = vsel %vm1464, %v1425, 0
  %v1487 = vsel %vm1464, %v1427, 0
  %v1490 = vsel %vm1464, %v1429, 0
  %v1493 = vsel %vm1464, %v1431, 0
  %v1496 = vsel %vm1464, %v1433, 0
  %v1499 = vsel %vm1464, %v1435, 0
  %v1502 = vsel %vm1464, %v1437, 0
  %v1505 = vsel %vm1464, %v1439, 0
  %v1508 = vsel %vm1464, %v1441, 0
  %v1511 = vsel %vm1464, %v1443, 0
  %v1514 = vsel %vm1464, %v1445, 0
  %v1517 = vsel %vm1464, %v1447, 0
  %v1520 = vsel %vm1464, %v1449, 0
  %v1523 = vsel %vm1464, %v1451, 0
  %v1526 = vsel %vm1464, %v1453, 0
  %v1529 = vsel %vm1464, %v1455, 0
  %v1532 = vsel %vm1464, %v1457, 0
  %v1535 = vsel %vm1464, %v1459, 0
  %v1538 = vsel %vm1464, %v1461, 0
  %v1541 = vsel %vm1464, %v1463, 0
  %1543 = vmatpush.msra.mxu0 %v1390
  %1544 = vmatpush.msra.mxu0 %v1388
  %1545 = vmatpush.msra.mxu0 %v1386
  %1546 = vmatpush.msra.mxu0 %v1384
  %1547 = vmatpush.msra.mxu0 %v1382
  %1548 = vmatpush.msra.mxu0 %v1380
  %1549 = vmatpush.msra.mxu0 %v1378
  %1550 = vmatpush.msra.mxu0 %v1376
  %1551 = vmatpush.msra.mxu0 %v1374
  %1552 = vmatpush.msra.mxu0 %v1372
  %1553 = vmatpush.msra.mxu0 %v1370
  %1554 = vmatpush.msra.mxu0 %v1368
  %1555 = vmatpush.msra.mxu0 %v1366
  %1556 = vmatpush.msra.mxu0 %v1364
  %1557 = vmatpush.msra.mxu0 %v1362
  %1558 = vmatpush.msra.mxu0 %v1360
  %1559 = vmatmul.f32.gmra.mxu0 %v1412
  %v1560 = vpop.f32.mrf.mxu0
  %v1561 = vadd.f32 0.0, %v1560
  %1562 = vmatmul.f32.gmra.mxu0 %v1414
  %v1563 = vpop.f32.mrf.mxu0
  %v1564 = vadd.f32 0.0, %v1563
  %1565 = vmatmul.f32.gmra.mxu0 %v1416
  %v1566 = vpop.f32.mrf.mxu0
  %v1567 = vadd.f32 0.0, %v1566
  %1568 = vmatmul.f32.gmra.mxu0 %v1418
  %v1569 = vpop.f32.mrf.mxu0
  %v1570 = vadd.f32 0.0, %v1569
  %1571 = vmatmul.f32.gmra.mxu0 %v1420
  %v1572 = vpop.f32.mrf.mxu0
  %v1573 = vadd.f32 0.0, %v1572
  %1574 = vmatmul.f32.gmra.mxu0 %v1422
  %v1575 = vpop.f32.mrf.mxu0
  %v1576 = vadd.f32 0.0, %v1575
  %1577 = vmatmul.f32.gmra.mxu0 %v1424
  %v1578 = vpop.f32.mrf.mxu0
  %v1579 = vadd.f32 0.0, %v1578
  %1580 = vmatmul.f32.gmra.mxu0 %v1426
  %v1581 = vpop.f32.mrf.mxu0
  %v1582 = vadd.f32 0.0, %v1581
  %1583 = vmatmul.f32.gmra.mxu0 %v1428
  %v1584 = vpop.f32.mrf.mxu0
  %v1585 = vadd.f32 0.0, %v1584
  %1586 = vmatmul.f32.gmra.mxu0 %v1430
  %v1587 = vpop.f32.mrf.mxu0
  %v1588 = vadd.f32 0.0, %v1587
  %1589 = vmatmul.f32.gmra.mxu0 %v1432
  %v1590 = vpop.f32.mrf.mxu0
  %v1591 = vadd.f32 0.0, %v1590
  %1592 = vmatmul.f32.gmra.mxu0 %v1434
  %v1593 = vpop.f32.mrf.mxu0
  %v1594 = vadd.f32 0.0, %v1593
  %1595 = vmatmul.f32.gmra.mxu0 %v1436
  %v1596 = vpop.f32.mrf.mxu0
  %v1597 = vadd.f32 0.0, %v1596
  %1598 = vmatmul.f32.gmra.mxu0 %v1438
  %v1599 = vpop.f32.mrf.mxu0
  %v1600 = vadd.f32 0.0, %v1599
  %1601 = vmatmul.f32.gmra.mxu0 %v1440
  %v1602 = vpop.f32.mrf.mxu0
  %v1603 = vadd.f32 0.0, %v1602
  %1604 = vmatmul.f32.gmra.mxu0 %v1442
  %v1605 = vpop.f32.mrf.mxu0
  %v1606 = vadd.f32 0.0, %v1605
  %1607 = vmatmul.f32.gmra.mxu0 %v1444
  %v1608 = vpop.f32.mrf.mxu0
  %v1609 = vadd.f32 0.0, %v1608
  %1610 = vmatmul.f32.gmra.mxu0 %v1446
  %v1611 = vpop.f32.mrf.mxu0
  %v1612 = vadd.f32 0.0, %v1611
  %1613 = vmatmul.f32.gmra.mxu0 %v1448
  %v1614 = vpop.f32.mrf.mxu0
  %v1615 = vadd.f32 0.0, %v1614
  %1616 = vmatmul.f32.gmra.mxu0 %v1450
  %v1617 = vpop.f32.mrf.mxu0
  %v1618 = vadd.f32 0.0, %v1617
  %1619 = vmatmul.f32.gmra.mxu0 %v1452
  %v1620 = vpop.f32.mrf.mxu0
  %v1621 = vadd.f32 0.0, %v1620
  %1622 = vmatmul.f32.gmra.mxu0 %v1454
  %v1623 = vpop.f32.mrf.mxu0
  %v1624 = vadd.f32 0.0, %v1623
  %1625 = vmatmul.f32.gmra.mxu0 %v1456
  %v1626 = vpop.f32.mrf.mxu0
  %v1627 = vadd.f32 0.0, %v1626
  %1628 = vmatmul.f32.gmra.mxu0 %v1458
  %v1629 = vpop.f32.mrf.mxu0
  %v1630 = vadd.f32 0.0, %v1629
  %1631 = vmatmul.f32.gmra.mxu0 %v1460
  %v1632 = vpop.f32.mrf.mxu0
  %v1633 = vadd.f32 0.0, %v1632
  %1634 = vmatmul.f32.gmra.mxu0 %v1462
  %v1635 = vpop.f32.mrf.mxu0
  %v1636 = vadd.f32 0.0, %v1635
  %1637 = vdwg.mxu0
  %1638 = vmatpush.msra.mxu0 0.0
  %1639 = vmatpush.msra.mxu0 0.0
  %1640 = vmatpush.msra.mxu0 0.0
  %1641 = vmatpush.msra.mxu0 0.0
  %1642 = vmatpush.msra.mxu0 0.0
  %1643 = vmatpush.msra.mxu0 0.0
  %1644 = vmatpush.msra.mxu0 %v1410
  %1645 = vmatpush.msra.mxu0 %v1408
  %1646 = vmatpush.msra.mxu0 %v1406
  %1647 = vmatpush.msra.mxu0 %v1404
  %1648 = vmatpush.msra.mxu0 %v1402
  %1649 = vmatpush.msra.mxu0 %v1400
  %1650 = vmatpush.msra.mxu0 %v1398
  %1651 = vmatpush.msra.mxu0 %v1396
  %1652 = vmatpush.msra.mxu0 %v1394
  %1653 = vmatpush.msra.mxu0 %v1392
  %1654 = vmatmul.f32.gmra.mxu0 %v1466
  %v1655 = vpop.f32.mrf.mxu0
  %v1656 = vadd.f32 %v1561, %v1655
  %1657 = vmatmul.f32.gmra.mxu0 %v1469
  %v1658 = vpop.f32.mrf.mxu0
  %v1659 = vadd.f32 %v1564, %v1658
  %1660 = vmatmul.f32.gmra.mxu0 %v1472
  %v1661 = vpop.f32.mrf.mxu0
  %v1662 = vadd.f32 %v1567, %v1661
  %1663 = vmatmul.f32.gmra.mxu0 %v1475
  %v1664 = vpop.f32.mrf.mxu0
  %v1665 = vadd.f32 %v1570, %v1664
  %1666 = vmatmul.f32.gmra.mxu0 %v1478
  %v1667 = vpop.f32.mrf.mxu0
  %v1668 = vadd.f32 %v1573, %v1667
  %1669 = vmatmul.f32.gmra.mxu0 %v1481
  %v1670 = vpop.f32.mrf.mxu0
  %v1671 = vadd.f32 %v1576, %v1670
  %1672 = vmatmul.f32.gmra.mxu0 %v1484
  %v1673 = vpop.f32.mrf.mxu0
  %v1674 = vadd.f32 %v1579, %v1673
  %1675 = vmatmul.f32.gmra.mxu0 %v1487
  %v1676 = vpop.f32.mrf.mxu0
  %v1677 = vadd.f32 %v1582, %v1676
  %1678 = vmatmul.f32.gmra.mxu0 %v1490
  %v1679 = vpop.f32.mrf.mxu0
  %v1680 = vadd.f32 %v1585, %v1679
  %1681 = vmatmul.f32.gmra.mxu0 %v1493
  %v1682 = vpop.f32.mrf.mxu0
  %v1683 = vadd.f32 %v1588, %v1682
  %1684 = vmatmul.f32.gmra.mxu0 %v1496
  %v1685 = vpop.f32.mrf.mxu0
  %v1686 = vadd.f32 %v1591, %v1685
  %1687 = vmatmul.f32.gmra.mxu0 %v1499
  %v1688 = vpop.f32.mrf.mxu0
  %v1689 = vadd.f32 %v1594, %v1688
  %1690 = vmatmul.f32.gmra.mxu0 %v1502
  %v1691 = vpop.f32.mrf.mxu0
  %v1692 = vadd.f32 %v1597, %v1691
  %1693 = vmatmul.f32.gmra.mxu0 %v1505
  %v1694 = vpop.f32.mrf.mxu0
  %v1695 = vadd.f32 %v1600, %v1694
  %1696 = vmatmul.f32.gmra.mxu0 %v1508
  %v1697 = vpop.f32.mrf.mxu0
  %v1698 = vadd.f32 %v1603, %v1697
  %1699 = vmatmul.f32.gmra.mxu0 %v1511
  %v1700 = vpop.f32.mrf.mxu0
  %v1701 = vadd.f32 %v1606, %v1700
  %1702 = vmatmul.f32.gmra.mxu0 %v1514
  %v1703 = vpop.f32.mrf.mxu0
  %v1704 = vadd.f32 %v1609, %v1703
  %1705 = vmatmul.f32.gmra.mxu0 %v1517
  %v1706 = vpop.f32.mrf.mxu0
  %v1707 = vadd.f32 %v1612, %v1706
  %1708 = vmatmul.f32.gmra.mxu0 %v1520
  %v1709 = vpop.f32.mrf.mxu0
  %v1710 = vadd.f32 %v1615, %v1709
  %1711 = vmatmul.f32.gmra.mxu0 %v1523
  %v1712 = vpop.f32.mrf.mxu0
  %v1713 = vadd.f32 %v1618, %v1712
  %1714 = vmatmul.f32.gmra.mxu0 %v1526
  %v1715 = vpop.f32.mrf.mxu0
  %v1716 = vadd.f32 %v1621, %v1715
  %1717 = vmatmul.f32.gmra.mxu0 %v1529
  %v1718 = vpop.f32.mrf.mxu0
  %v1719 = vadd.f32 %v1624, %v1718
  %1720 = vmatmul.f32.gmra.mxu0 %v1532
  %v1721 = vpop.f32.mrf.mxu0
  %v1722 = vadd.f32 %v1627, %v1721
  %1723 = vmatmul.f32.gmra.mxu0 %v1535
  %v1724 = vpop.f32.mrf.mxu0
  %v1725 = vadd.f32 %v1630, %v1724
  %1726 = vmatmul.f32.gmra.mxu0 %v1538
  %v1727 = vpop.f32.mrf.mxu0
  %v1728 = vadd.f32 %v1633, %v1727
  %1729 = vmatmul.f32.gmra.mxu0 %v1541
  %v1730 = vpop.f32.mrf.mxu0
  %v1731 = vadd.f32 %v1636, %v1730
  %1732 = vdwg.mxu0
  %1733 = vmatpush.msra.mxu0 %v1391
  %1734 = vmatpush.msra.mxu0 %v1389
  %1735 = vmatpush.msra.mxu0 %v1387
  %1736 = vmatpush.msra.mxu0 %v1385
  %1737 = vmatpush.msra.mxu0 %v1383
  %1738 = vmatpush.msra.mxu0 %v1381
  %1739 = vmatpush.msra.mxu0 %v1379
  %1740 = vmatpush.msra.mxu0 %v1377
  %1741 = vmatpush.msra.mxu0 %v1375
  %1742 = vmatpush.msra.mxu0 %v1373
  %1743 = vmatpush.msra.mxu0 %v1371
  %1744 = vmatpush.msra.mxu0 %v1369
  %1745 = vmatpush.msra.mxu0 %v1367
  %1746 = vmatpush.msra.mxu0 %v1365
  %1747 = vmatpush.msra.mxu0 %v1363
  %1748 = vmatpush.msra.mxu0 %v1361
  %1749 = vmatmul.f32.gmra.mxu0 %v1412
  %v1750 = vpop.f32.mrf.mxu0
  %v1751 = vadd.f32 0.0, %v1750
  %1752 = vmatmul.f32.gmra.mxu0 %v1414
  %v1753 = vpop.f32.mrf.mxu0
  %v1754 = vadd.f32 0.0, %v1753
  %1755 = vmatmul.f32.gmra.mxu0 %v1416
  %v1756 = vpop.f32.mrf.mxu0
  %v1757 = vadd.f32 0.0, %v1756
  %1758 = vmatmul.f32.gmra.mxu0 %v1418
  %v1759 = vpop.f32.mrf.mxu0
  %v1760 = vadd.f32 0.0, %v1759
  %1761 = vmatmul.f32.gmra.mxu0 %v1420
  %v1762 = vpop.f32.mrf.mxu0
  %v1763 = vadd.f32 0.0, %v1762
  %1764 = vmatmul.f32.gmra.mxu0 %v1422
  %v1765 = vpop.f32.mrf.mxu0
  %v1766 = vadd.f32 0.0, %v1765
  %1767 = vmatmul.f32.gmra.mxu0 %v1424
  %v1768 = vpop.f32.mrf.mxu0
  %v1769 = vadd.f32 0.0, %v1768
  %1770 = vmatmul.f32.gmra.mxu0 %v1426
  %v1771 = vpop.f32.mrf.mxu0
  %v1772 = vadd.f32 0.0, %v1771
  %1773 = vmatmul.f32.gmra.mxu0 %v1428
  %v1774 = vpop.f32.mrf.mxu0
  %v1775 = vadd.f32 0.0, %v1774
  %1776 = vmatmul.f32.gmra.mxu0 %v1430
  %v1777 = vpop.f32.mrf.mxu0
  %v1778 = vadd.f32 0.0, %v1777
  %1779 = vmatmul.f32.gmra.mxu0 %v1432
  %v1780 = vpop.f32.mrf.mxu0
  %v1781 = vadd.f32 0.0, %v1780
  %1782 = vmatmul.f32.gmra.mxu0 %v1434
  %v1783 = vpop.f32.mrf.mxu0
  %v1784 = vadd.f32 0.0, %v1783
  %1785 = vmatmul.f32.gmra.mxu0 %v1436
  %v1786 = vpop.f32.mrf.mxu0
  %v1787 = vadd.f32 0.0, %v1786
  %1788 = vmatmul.f32.gmra.mxu0 %v1438
  %v1789 = vpop.f32.mrf.mxu0
  %v1790 = vadd.f32 0.0, %v1789
  %1791 = vmatmul.f32.gmra.mxu0 %v1440
  %v1792 = vpop.f32.mrf.mxu0
  %v1793 = vadd.f32 0.0, %v1792
  %1794 = vmatmul.f32.gmra.mxu0 %v1442
  %v1795 = vpop.f32.mrf.mxu0
  %v1796 = vadd.f32 0.0, %v1795
  %1797 = vmatmul.f32.gmra.mxu0 %v1444
  %v1798 = vpop.f32.mrf.mxu0
  %v1799 = vadd.f32 0.0, %v1798
  %1800 = vmatmul.f32.gmra.mxu0 %v1446
  %v1801 = vpop.f32.mrf.mxu0
  %v1802 = vadd.f32 0.0, %v1801
  %1803 = vmatmul.f32.gmra.mxu0 %v1448
  %v1804 = vpop.f32.mrf.mxu0
  %v1805 = vadd.f32 0.0, %v1804
  %1806 = vmatmul.f32.gmra.mxu0 %v1450
  %v1807 = vpop.f32.mrf.mxu0
  %v1808 = vadd.f32 0.0, %v1807
  %1809 = vmatmul.f32.gmra.mxu0 %v1452
  %v1810 = vpop.f32.mrf.mxu0
  %v1811 = vadd.f32 0.0, %v1810
  %1812 = vmatmul.f32.gmra.mxu0 %v1454
  %v1813 = vpop.f32.mrf.mxu0
  %v1814 = vadd.f32 0.0, %v1813
  %1815 = vmatmul.f32.gmra.mxu0 %v1456
  %v1816 = vpop.f32.mrf.mxu0
  %v1817 = vadd.f32 0.0, %v1816
  %1818 = vmatmul.f32.gmra.mxu0 %v1458
  %v1819 = vpop.f32.mrf.mxu0
  %v1820 = vadd.f32 0.0, %v1819
  %1821 = vmatmul.f32.gmra.mxu0 %v1460
  %v1822 = vpop.f32.mrf.mxu0
  %v1823 = vadd.f32 0.0, %v1822
  %1824 = vmatmul.f32.gmra.mxu0 %v1462
  %v1825 = vpop.f32.mrf.mxu0
  %v1826 = vadd.f32 0.0, %v1825
  %1827 = vdwg.mxu0
  %1828 = vmatpush.msra.mxu0 0.0
  %1829 = vmatpush.msra.mxu0 0.0
  %1830 = vmatpush.msra.mxu0 0.0
  %1831 = vmatpush.msra.mxu0 0.0
  %1832 = vmatpush.msra.mxu0 0.0
  %1833 = vmatpush.msra.mxu0 0.0
  %1834 = vmatpush.msra.mxu0 %v1411
  %1835 = vmatpush.msra.mxu0 %v1409
  %1836 = vmatpush.msra.mxu0 %v1407
  %1837 = vmatpush.msra.mxu0 %v1405
  %1838 = vmatpush.msra.mxu0 %v1403
  %1839 = vmatpush.msra.mxu0 %v1401
  %1840 = vmatpush.msra.mxu0 %v1399
  %1841 = vmatpush.msra.mxu0 %v1397
  %1842 = vmatpush.msra.mxu0 %v1395
  %1843 = vmatpush.msra.mxu0 %v1393
  %1844 = vmatmul.f32.gmra.mxu0 %v1466
  %v1845 = vpop.f32.mrf.mxu0
  %v1846 = vadd.f32 %v1751, %v1845
  %1847 = vmatmul.f32.gmra.mxu0 %v1469
  %v1848 = vpop.f32.mrf.mxu0
  %v1849 = vadd.f32 %v1754, %v1848
  %1850 = vmatmul.f32.gmra.mxu0 %v1472
  %v1851 = vpop.f32.mrf.mxu0
  %v1852 = vadd.f32 %v1757, %v1851
  %1853 = vmatmul.f32.gmra.mxu0 %v1475
  %v1854 = vpop.f32.mrf.mxu0
  %v1855 = vadd.f32 %v1760, %v1854
  %1856 = vmatmul.f32.gmra.mxu0 %v1478
  %v1857 = vpop.f32.mrf.mxu0
  %v1858 = vadd.f32 %v1763, %v1857
  %1859 = vmatmul.f32.gmra.mxu0 %v1481
  %v1860 = vpop.f32.mrf.mxu0
  %v1861 = vadd.f32 %v1766, %v1860
  %1862 = vmatmul.f32.gmra.mxu0 %v1484
  %v1863 = vpop.f32.mrf.mxu0
  %v1864 = vadd.f32 %v1769, %v1863
  %1865 = vmatmul.f32.gmra.mxu0 %v1487
  %v1866 = vpop.f32.mrf.mxu0
  %v1867 = vadd.f32 %v1772, %v1866
  %1868 = vmatmul.f32.gmra.mxu0 %v1490
  %v1869 = vpop.f32.mrf.mxu0
  %v1870 = vadd.f32 %v1775, %v1869
  %1871 = vmatmul.f32.gmra.mxu0 %v1493
  %v1872 = vpop.f32.mrf.mxu0
  %v1873 = vadd.f32 %v1778, %v1872
  %1874 = vmatmul.f32.gmra.mxu0 %v1496
  %v1875 = vpop.f32.mrf.mxu0
  %v1876 = vadd.f32 %v1781, %v1875
  %1877 = vmatmul.f32.gmra.mxu0 %v1499
  %v1878 = vpop.f32.mrf.mxu0
  %v1879 = vadd.f32 %v1784, %v1878
  %1880 = vmatmul.f32.gmra.mxu0 %v1502
  %v1881 = vpop.f32.mrf.mxu0
  %v1882 = vadd.f32 %v1787, %v1881
  %1883 = vmatmul.f32.gmra.mxu0 %v1505
  %v1884 = vpop.f32.mrf.mxu0
  %v1885 = vadd.f32 %v1790, %v1884
  %1886 = vmatmul.f32.gmra.mxu0 %v1508
  %v1887 = vpop.f32.mrf.mxu0
  %v1888 = vadd.f32 %v1793, %v1887
  %1889 = vmatmul.f32.gmra.mxu0 %v1511
  %v1890 = vpop.f32.mrf.mxu0
  %v1891 = vadd.f32 %v1796, %v1890
  %1892 = vmatmul.f32.gmra.mxu0 %v1514
  %v1893 = vpop.f32.mrf.mxu0
  %v1894 = vadd.f32 %v1799, %v1893
  %1895 = vmatmul.f32.gmra.mxu0 %v1517
  %v1896 = vpop.f32.mrf.mxu0
  %v1897 = vadd.f32 %v1802, %v1896
  %1898 = vmatmul.f32.gmra.mxu0 %v1520
  %v1899 = vpop.f32.mrf.mxu0
  %v1900 = vadd.f32 %v1805, %v1899
  %1901 = vmatmul.f32.gmra.mxu0 %v1523
  %v1902 = vpop.f32.mrf.mxu0
  %v1903 = vadd.f32 %v1808, %v1902
  %1904 = vmatmul.f32.gmra.mxu0 %v1526
  %v1905 = vpop.f32.mrf.mxu0
  %v1906 = vadd.f32 %v1811, %v1905
  %1907 = vmatmul.f32.gmra.mxu0 %v1529
  %v1908 = vpop.f32.mrf.mxu0
  %v1909 = vadd.f32 %v1814, %v1908
  %1910 = vmatmul.f32.gmra.mxu0 %v1532
  %v1911 = vpop.f32.mrf.mxu0
  %v1912 = vadd.f32 %v1817, %v1911
  %1913 = vmatmul.f32.gmra.mxu0 %v1535
  %v1914 = vpop.f32.mrf.mxu0
  %v1915 = vadd.f32 %v1820, %v1914
  %1916 = vmatmul.f32.gmra.mxu0 %v1538
  %v1917 = vpop.f32.mrf.mxu0
  %v1918 = vadd.f32 %v1823, %v1917
  %1919 = vmatmul.f32.gmra.mxu0 %v1541
  %v1920 = vpop.f32.mrf.mxu0
  %v1921 = vadd.f32 %v1826, %v1920
  %1922 = vdwg.mxu0
  %v1923 = vsel %vm130, %v1846, 0.0
  %v1924 = vadd.f32 %v1656, %v1923
  %1925 = vadd.xlane.f32.xlu0 %v1924
  %v1926 = vpop.xlane.xlu0 %1925
  %v1927 = vsel %vm130, %v1849, 0.0
  %v1928 = vadd.f32 %v1659, %v1927
  %1929 = vadd.xlane.f32.xlu0 %v1928
  %v1930 = vpop.xlane.xlu0 %1929
  %v1931 = vsel %vm130, %v1852, 0.0
  %v1932 = vadd.f32 %v1662, %v1931
  %1933 = vadd.xlane.f32.xlu0 %v1932
  %v1934 = vpop.xlane.xlu0 %1933
  %v1935 = vsel %vm130, %v1855, 0.0
  %v1936 = vadd.f32 %v1665, %v1935
  %1937 = vadd.xlane.f32.xlu0 %v1936
  %v1938 = vpop.xlane.xlu0 %1937
  %v1939 = vsel %vm130, %v1858, 0.0
  %v1940 = vadd.f32 %v1668, %v1939
  %1941 = vadd.xlane.f32.xlu0 %v1940
  %v1942 = vpop.xlane.xlu0 %1941
  %v1943 = vsel %vm130, %v1861, 0.0
  %v1944 = vadd.f32 %v1671, %v1943
  %1945 = vadd.xlane.f32.xlu0 %v1944
  %v1946 = vpop.xlane.xlu0 %1945
  %v1947 = vsel %vm130, %v1864, 0.0
  %v1948 = vadd.f32 %v1674, %v1947
  %1949 = vadd.xlane.f32.xlu0 %v1948
  %v1950 = vpop.xlane.xlu0 %1949
  %v1951 = vsel %vm130, %v1867, 0.0
  %v1952 = vadd.f32 %v1677, %v1951
  %1953 = vadd.xlane.f32.xlu0 %v1952
  %v1954 = vpop.xlane.xlu0 %1953
  %v1955 = vsel %vm130, %v1870, 0.0
  %v1956 = vadd.f32 %v1680, %v1955
  %1957 = vadd.xlane.f32.xlu0 %v1956
  %v1958 = vpop.xlane.xlu0 %1957
  %v1959 = vsel %vm130, %v1873, 0.0
  %v1960 = vadd.f32 %v1683, %v1959
  %1961 = vadd.xlane.f32.xlu0 %v1960
  %v1962 = vpop.xlane.xlu0 %1961
  %v1963 = vsel %vm130, %v1876, 0.0
  %v1964 = vadd.f32 %v1686, %v1963
  %1965 = vadd.xlane.f32.xlu0 %v1964
  %v1966 = vpop.xlane.xlu0 %1965
  %v1967 = vsel %vm130, %v1879, 0.0
  %v1968 = vadd.f32 %v1689, %v1967
  %1969 = vadd.xlane.f32.xlu0 %v1968
  %v1970 = vpop.xlane.xlu0 %1969
  %v1971 = vsel %vm130, %v1882, 0.0
  %v1972 = vadd.f32 %v1692, %v1971
  %1973 = vadd.xlane.f32.xlu0 %v1972
  %v1974 = vpop.xlane.xlu0 %1973
  %v1975 = vsel %vm130, %v1885, 0.0
  %v1976 = vadd.f32 %v1695, %v1975
  %1977 = vadd.xlane.f32.xlu0 %v1976
  %v1978 = vpop.xlane.xlu0 %1977
  %v1979 = vsel %vm130, %v1888, 0.0
  %v1980 = vadd.f32 %v1698, %v1979
  %1981 = vadd.xlane.f32.xlu0 %v1980
  %v1982 = vpop.xlane.xlu0 %1981
  %v1983 = vsel %vm130, %v1891, 0.0
  %v1984 = vadd.f32 %v1701, %v1983
  %1985 = vadd.xlane.f32.xlu0 %v1984
  %v1986 = vpop.xlane.xlu0 %1985
  %v1987 = vsel %vm130, %v1894, 0.0
  %v1988 = vadd.f32 %v1704, %v1987
  %1989 = vadd.xlane.f32.xlu0 %v1988
  %v1990 = vpop.xlane.xlu0 %1989
  %v1991 = vsel %vm130, %v1897, 0.0
  %v1992 = vadd.f32 %v1707, %v1991
  %1993 = vadd.xlane.f32.xlu0 %v1992
  %v1994 = vpop.xlane.xlu0 %1993
  %v1995 = vsel %vm130, %v1900, 0.0
  %v1996 = vadd.f32 %v1710, %v1995
  %1997 = vadd.xlane.f32.xlu0 %v1996
  %v1998 = vpop.xlane.xlu0 %1997
  %v1999 = vsel %vm130, %v1903, 0.0
  %v2000 = vadd.f32 %v1713, %v1999
  %2001 = vadd.xlane.f32.xlu0 %v2000
  %v2002 = vpop.xlane.xlu0 %2001
  %v2003 = vsel %vm130, %v1906, 0.0
  %v2004 = vadd.f32 %v1716, %v2003
  %2005 = vadd.xlane.f32.xlu0 %v2004
  %v2006 = vpop.xlane.xlu0 %2005
  %v2007 = vsel %vm130, %v1909, 0.0
  %v2008 = vadd.f32 %v1719, %v2007
  %2009 = vadd.xlane.f32.xlu0 %v2008
  %v2010 = vpop.xlane.xlu0 %2009
  %v2011 = vsel %vm130, %v1912, 0.0
  %v2012 = vadd.f32 %v1722, %v2011
  %2013 = vadd.xlane.f32.xlu0 %v2012
  %v2014 = vpop.xlane.xlu0 %2013
  %v2015 = vsel %vm130, %v1915, 0.0
  %v2016 = vadd.f32 %v1725, %v2015
  %2017 = vadd.xlane.f32.xlu0 %v2016
  %v2018 = vpop.xlane.xlu0 %2017
  %v2019 = vsel %vm130, %v1918, 0.0
  %v2020 = vadd.f32 %v1728, %v2019
  %2021 = vadd.xlane.f32.xlu0 %v2020
  %v2022 = vpop.xlane.xlu0 %2021
  %v2023 = vsel %vm130, %v1921, 0.0
  %v2024 = vadd.f32 %v1731, %v2023
  %2025 = vadd.xlane.f32.xlu0 %v2024
  %v2026 = vpop.xlane.xlu0 %2025
  %v2027 = vmul.f32 %v1926, %v241
  %v2028 = vmul.f32 %v1930, %v241
  %v2029 = vmul.f32 %v1934, %v241
  %v2030 = vmul.f32 %v1938, %v241
  %v2031 = vmul.f32 %v1942, %v241
  %v2032 = vmul.f32 %v1946, %v241
  %v2033 = vmul.f32 %v1950, %v241
  %v2034 = vmul.f32 %v1954, %v241
  %v2035 = vmul.f32 %v1958, %v241
  %v2036 = vmul.f32 %v1962, %v241
  %v2037 = vmul.f32 %v1966, %v241
  %v2038 = vmul.f32 %v1970, %v241
  %v2039 = vmul.f32 %v1974, %v241
  %v2040 = vmul.f32 %v1978, %v241
  %v2041 = vmul.f32 %v1982, %v241
  %v2042 = vmul.f32 %v1986, %v241
  %v2043 = vmul.f32 %v1990, %v241
  %v2044 = vmul.f32 %v1994, %v241
  %v2045 = vmul.f32 %v1998, %v241
  %v2046 = vmul.f32 %v2002, %v241
  %v2047 = vmul.f32 %v2006, %v241
  %v2048 = vmul.f32 %v2010, %v241
  %v2049 = vmul.f32 %v2014, %v241
  %v2050 = vmul.f32 %v2018, %v241
  %v2051 = vmul.f32 %v2022, %v241
  %v2052 = vmul.f32 %v2026, %v241
  %v2053 = vmul.f32 %v1656, %v1656
  %v2054 = vmul.f32 %v1846, %v1846
  %v2055 = vmul.f32 %v1659, %v1659
  %v2056 = vmul.f32 %v1849, %v1849
  %v2057 = vmul.f32 %v1662, %v1662
  %v2058 = vmul.f32 %v1852, %v1852
  %v2059 = vmul.f32 %v1665, %v1665
  %v2060 = vmul.f32 %v1855, %v1855
  %v2061 = vmul.f32 %v1668, %v1668
  %v2062 = vmul.f32 %v1858, %v1858
  %v2063 = vmul.f32 %v1671, %v1671
  %v2064 = vmul.f32 %v1861, %v1861
  %v2065 = vmul.f32 %v1674, %v1674
  %v2066 = vmul.f32 %v1864, %v1864
  %v2067 = vmul.f32 %v1677, %v1677
  %v2068 = vmul.f32 %v1867, %v1867
  %v2069 = vmul.f32 %v1680, %v1680
  %v2070 = vmul.f32 %v1870, %v1870
  %v2071 = vmul.f32 %v1683, %v1683
  %v2072 = vmul.f32 %v1873, %v1873
  %v2073 = vmul.f32 %v1686, %v1686
  %v2074 = vmul.f32 %v1876, %v1876
  %v2075 = vmul.f32 %v1689, %v1689
  %v2076 = vmul.f32 %v1879, %v1879
  %v2077 = vmul.f32 %v1692, %v1692
  %v2078 = vmul.f32 %v1882, %v1882
  %v2079 = vmul.f32 %v1695, %v1695
  %v2080 = vmul.f32 %v1885, %v1885
  %v2081 = vmul.f32 %v1698, %v1698
  %v2082 = vmul.f32 %v1888, %v1888
  %v2083 = vmul.f32 %v1701, %v1701
  %v2084 = vmul.f32 %v1891, %v1891
  %v2085 = vmul.f32 %v1704, %v1704
  %v2086 = vmul.f32 %v1894, %v1894
  %v2087 = vmul.f32 %v1707, %v1707
  %v2088 = vmul.f32 %v1897, %v1897
  %v2089 = vmul.f32 %v1710, %v1710
  %v2090 = vmul.f32 %v1900, %v1900
  %v2091 = vmul.f32 %v1713, %v1713
  %v2092 = vmul.f32 %v1903, %v1903
  %v2093 = vmul.f32 %v1716, %v1716
  %v2094 = vmul.f32 %v1906, %v1906
  %v2095 = vmul.f32 %v1719, %v1719
  %v2096 = vmul.f32 %v1909, %v1909
  %v2097 = vmul.f32 %v1722, %v1722
  %v2098 = vmul.f32 %v1912, %v1912
  %v2099 = vmul.f32 %v1725, %v1725
  %v2100 = vmul.f32 %v1915, %v1915
  %v2101 = vmul.f32 %v1728, %v1728
  %v2102 = vmul.f32 %v1918, %v1918
  %v2103 = vmul.f32 %v1731, %v1731
  %v2104 = vmul.f32 %v1921, %v1921
  %v2105 = vsel %vm130, %v2054, 0.0
  %v2106 = vadd.f32 %v2053, %v2105
  %2107 = vadd.xlane.f32.xlu0 %v2106
  %v2108 = vpop.xlane.xlu0 %2107
  %v2109 = vsel %vm130, %v2056, 0.0
  %v2110 = vadd.f32 %v2055, %v2109
  %2111 = vadd.xlane.f32.xlu0 %v2110
  %v2112 = vpop.xlane.xlu0 %2111
  %v2113 = vsel %vm130, %v2058, 0.0
  %v2114 = vadd.f32 %v2057, %v2113
  %2115 = vadd.xlane.f32.xlu0 %v2114
  %v2116 = vpop.xlane.xlu0 %2115
  %v2117 = vsel %vm130, %v2060, 0.0
  %v2118 = vadd.f32 %v2059, %v2117
  %2119 = vadd.xlane.f32.xlu0 %v2118
  %v2120 = vpop.xlane.xlu0 %2119
  %v2121 = vsel %vm130, %v2062, 0.0
  %v2122 = vadd.f32 %v2061, %v2121
  %2123 = vadd.xlane.f32.xlu0 %v2122
  %v2124 = vpop.xlane.xlu0 %2123
  %v2125 = vsel %vm130, %v2064, 0.0
  %v2126 = vadd.f32 %v2063, %v2125
  %2127 = vadd.xlane.f32.xlu0 %v2126
  %v2128 = vpop.xlane.xlu0 %2127
  %v2129 = vsel %vm130, %v2066, 0.0
  %v2130 = vadd.f32 %v2065, %v2129
  %2131 = vadd.xlane.f32.xlu0 %v2130
  %v2132 = vpop.xlane.xlu0 %2131
  %v2133 = vsel %vm130, %v2068, 0.0
  %v2134 = vadd.f32 %v2067, %v2133
  %2135 = vadd.xlane.f32.xlu0 %v2134
  %v2136 = vpop.xlane.xlu0 %2135
  %v2137 = vsel %vm130, %v2070, 0.0
  %v2138 = vadd.f32 %v2069, %v2137
  %2139 = vadd.xlane.f32.xlu0 %v2138
  %v2140 = vpop.xlane.xlu0 %2139
  %v2141 = vsel %vm130, %v2072, 0.0
  %v2142 = vadd.f32 %v2071, %v2141
  %2143 = vadd.xlane.f32.xlu0 %v2142
  %v2144 = vpop.xlane.xlu0 %2143
  %v2145 = vsel %vm130, %v2074, 0.0
  %v2146 = vadd.f32 %v2073, %v2145
  %2147 = vadd.xlane.f32.xlu0 %v2146
  %v2148 = vpop.xlane.xlu0 %2147
  %v2149 = vsel %vm130, %v2076, 0.0
  %v2150 = vadd.f32 %v2075, %v2149
  %2151 = vadd.xlane.f32.xlu0 %v2150
  %v2152 = vpop.xlane.xlu0 %2151
  %v2153 = vsel %vm130, %v2078, 0.0
  %v2154 = vadd.f32 %v2077, %v2153
  %2155 = vadd.xlane.f32.xlu0 %v2154
  %v2156 = vpop.xlane.xlu0 %2155
  %v2157 = vsel %vm130, %v2080, 0.0
  %v2158 = vadd.f32 %v2079, %v2157
  %2159 = vadd.xlane.f32.xlu0 %v2158
  %v2160 = vpop.xlane.xlu0 %2159
  %v2161 = vsel %vm130, %v2082, 0.0
  %v2162 = vadd.f32 %v2081, %v2161
  %2163 = vadd.xlane.f32.xlu0 %v2162
  %v2164 = vpop.xlane.xlu0 %2163
  %v2165 = vsel %vm130, %v2084, 0.0
  %v2166 = vadd.f32 %v2083, %v2165
  %2167 = vadd.xlane.f32.xlu0 %v2166
  %v2168 = vpop.xlane.xlu0 %2167
  %v2169 = vsel %vm130, %v2086, 0.0
  %v2170 = vadd.f32 %v2085, %v2169
  %2171 = vadd.xlane.f32.xlu0 %v2170
  %v2172 = vpop.xlane.xlu0 %2171
  %v2173 = vsel %vm130, %v2088, 0.0
  %v2174 = vadd.f32 %v2087, %v2173
  %2175 = vadd.xlane.f32.xlu0 %v2174
  %v2176 = vpop.xlane.xlu0 %2175
  %v2177 = vsel %vm130, %v2090, 0.0
  %v2178 = vadd.f32 %v2089, %v2177
  %2179 = vadd.xlane.f32.xlu0 %v2178
  %v2180 = vpop.xlane.xlu0 %2179
  %v2181 = vsel %vm130, %v2092, 0.0
  %v2182 = vadd.f32 %v2091, %v2181
  %2183 = vadd.xlane.f32.xlu0 %v2182
  %v2184 = vpop.xlane.xlu0 %2183
  %v2185 = vsel %vm130, %v2094, 0.0
  %v2186 = vadd.f32 %v2093, %v2185
  %2187 = vadd.xlane.f32.xlu0 %v2186
  %v2188 = vpop.xlane.xlu0 %2187
  %v2189 = vsel %vm130, %v2096, 0.0
  %v2190 = vadd.f32 %v2095, %v2189
  %2191 = vadd.xlane.f32.xlu0 %v2190
  %v2192 = vpop.xlane.xlu0 %2191
  %v2193 = vsel %vm130, %v2098, 0.0
  %v2194 = vadd.f32 %v2097, %v2193
  %2195 = vadd.xlane.f32.xlu0 %v2194
  %v2196 = vpop.xlane.xlu0 %2195
  %v2197 = vsel %vm130, %v2100, 0.0
  %v2198 = vadd.f32 %v2099, %v2197
  %2199 = vadd.xlane.f32.xlu0 %v2198
  %v2200 = vpop.xlane.xlu0 %2199
  %v2201 = vsel %vm130, %v2102, 0.0
  %v2202 = vadd.f32 %v2101, %v2201
  %2203 = vadd.xlane.f32.xlu0 %v2202
  %v2204 = vpop.xlane.xlu0 %2203
  %v2205 = vsel %vm130, %v2104, 0.0
  %v2206 = vadd.f32 %v2103, %v2205
  %2207 = vadd.xlane.f32.xlu0 %v2206
  %v2208 = vpop.xlane.xlu0 %2207
  %v2209 = vmul.f32 %v2108, %v241
  %v2210 = vmul.f32 %v2112, %v241
  %v2211 = vmul.f32 %v2116, %v241
  %v2212 = vmul.f32 %v2120, %v241
  %v2213 = vmul.f32 %v2124, %v241
  %v2214 = vmul.f32 %v2128, %v241
  %v2215 = vmul.f32 %v2132, %v241
  %v2216 = vmul.f32 %v2136, %v241
  %v2217 = vmul.f32 %v2140, %v241
  %v2218 = vmul.f32 %v2144, %v241
  %v2219 = vmul.f32 %v2148, %v241
  %v2220 = vmul.f32 %v2152, %v241
  %v2221 = vmul.f32 %v2156, %v241
  %v2222 = vmul.f32 %v2160, %v241
  %v2223 = vmul.f32 %v2164, %v241
  %v2224 = vmul.f32 %v2168, %v241
  %v2225 = vmul.f32 %v2172, %v241
  %v2226 = vmul.f32 %v2176, %v241
  %v2227 = vmul.f32 %v2180, %v241
  %v2228 = vmul.f32 %v2184, %v241
  %v2229 = vmul.f32 %v2188, %v241
  %v2230 = vmul.f32 %v2192, %v241
  %v2231 = vmul.f32 %v2196, %v241
  %v2232 = vmul.f32 %v2200, %v241
  %v2233 = vmul.f32 %v2204, %v241
  %v2234 = vmul.f32 %v2208, %v241
  %v2235 = vmul.f32 %v2027, %v2027
  %v2236 = vmul.f32 %v2028, %v2028
  %v2237 = vmul.f32 %v2029, %v2029
  %v2238 = vmul.f32 %v2030, %v2030
  %v2239 = vmul.f32 %v2031, %v2031
  %v2240 = vmul.f32 %v2032, %v2032
  %v2241 = vmul.f32 %v2033, %v2033
  %v2242 = vmul.f32 %v2034, %v2034
  %v2243 = vmul.f32 %v2035, %v2035
  %v2244 = vmul.f32 %v2036, %v2036
  %v2245 = vmul.f32 %v2037, %v2037
  %v2246 = vmul.f32 %v2038, %v2038
  %v2247 = vmul.f32 %v2039, %v2039
  %v2248 = vmul.f32 %v2040, %v2040
  %v2249 = vmul.f32 %v2041, %v2041
  %v2250 = vmul.f32 %v2042, %v2042
  %v2251 = vmul.f32 %v2043, %v2043
  %v2252 = vmul.f32 %v2044, %v2044
  %v2253 = vmul.f32 %v2045, %v2045
  %v2254 = vmul.f32 %v2046, %v2046
  %v2255 = vmul.f32 %v2047, %v2047
  %v2256 = vmul.f32 %v2048, %v2048
  %v2257 = vmul.f32 %v2049, %v2049
  %v2258 = vmul.f32 %v2050, %v2050
  %v2259 = vmul.f32 %v2051, %v2051
  %v2260 = vmul.f32 %v2052, %v2052
  %v2261 = vsub.f32 %v2209, %v2235
  %v2262 = vsub.f32 %v2210, %v2236
  %v2263 = vsub.f32 %v2211, %v2237
  %v2264 = vsub.f32 %v2212, %v2238
  %v2265 = vsub.f32 %v2213, %v2239
  %v2266 = vsub.f32 %v2214, %v2240
  %v2267 = vsub.f32 %v2215, %v2241
  %v2268 = vsub.f32 %v2216, %v2242
  %v2269 = vsub.f32 %v2217, %v2243
  %v2270 = vsub.f32 %v2218, %v2244
  %v2271 = vsub.f32 %v2219, %v2245
  %v2272 = vsub.f32 %v2220, %v2246
  %v2273 = vsub.f32 %v2221, %v2247
  %v2274 = vsub.f32 %v2222, %v2248
  %v2275 = vsub.f32 %v2223, %v2249
  %v2276 = vsub.f32 %v2224, %v2250
  %v2277 = vsub.f32 %v2225, %v2251
  %v2278 = vsub.f32 %v2226, %v2252
  %v2279 = vsub.f32 %v2227, %v2253
  %v2280 = vsub.f32 %v2228, %v2254
  %v2281 = vsub.f32 %v2229, %v2255
  %v2282 = vsub.f32 %v2230, %v2256
  %v2283 = vsub.f32 %v2231, %v2257
  %v2284 = vsub.f32 %v2232, %v2258
  %v2285 = vsub.f32 %v2233, %v2259
  %v2286 = vsub.f32 %v2234, %v2260
  %v2287 = vmax.f32 %v2261, 0.0
  %v2288 = vmax.f32 %v2262, 0.0
  %v2289 = vmax.f32 %v2263, 0.0
  %v2290 = vmax.f32 %v2264, 0.0
  %v2291 = vmax.f32 %v2265, 0.0
  %v2292 = vmax.f32 %v2266, 0.0
  %v2293 = vmax.f32 %v2267, 0.0
  %v2294 = vmax.f32 %v2268, 0.0
  %v2295 = vmax.f32 %v2269, 0.0
  %v2296 = vmax.f32 %v2270, 0.0
  %v2297 = vmax.f32 %v2271, 0.0
  %v2298 = vmax.f32 %v2272, 0.0
  %v2299 = vmax.f32 %v2273, 0.0
  %v2300 = vmax.f32 %v2274, 0.0
  %v2301 = vmax.f32 %v2275, 0.0
  %v2302 = vmax.f32 %v2276, 0.0
  %v2303 = vmax.f32 %v2277, 0.0
  %v2304 = vmax.f32 %v2278, 0.0
  %v2305 = vmax.f32 %v2279, 0.0
  %v2306 = vmax.f32 %v2280, 0.0
  %v2307 = vmax.f32 %v2281, 0.0
  %v2308 = vmax.f32 %v2282, 0.0
  %v2309 = vmax.f32 %v2283, 0.0
  %v2310 = vmax.f32 %v2284, 0.0
  %v2311 = vmax.f32 %v2285, 0.0
  %v2312 = vmax.f32 %v2286, 0.0
  %v2313 = vld [vmem:[%s5] sm:$0xff]
  %v2314 = vld [vmem:[%s5 + $0x8] sm:$0xff]
  %v2315 = vld [vmem:[%s5 + $0x10] sm:$0xff]
  %v2316 = vld [vmem:[%s5 + $0x18] sm:$0xff]
  %v2317 = vld [vmem:[%s5 + $0x20] sm:$0xff]
  %v2318 = vld [vmem:[%s5 + $0x28] sm:$0xff]
  %v2319 = vld [vmem:[%s5 + $0x30] sm:$0xff]
  %v2320 = vld [vmem:[%s5 + $0x38] sm:$0xff]
  %v2321 = vld [vmem:[%s5 + $0x40] sm:$0xff]
  %v2322 = vld [vmem:[%s5 + $0x48] sm:$0xff]
  %v2323 = vld [vmem:[%s5 + $0x50] sm:$0xff]
  %v2324 = vld [vmem:[%s5 + $0x58] sm:$0xff]
  %v2325 = vld [vmem:[%s5 + $0x60] sm:$0xff]
  %v2326 = vld [vmem:[%s5 + $0x68] sm:$0xff]
  %v2327 = vld [vmem:[%s5 + $0x70] sm:$0xff]
  %v2328 = vld [vmem:[%s5 + $0x78] sm:$0xff]
  %v2329 = vld [vmem:[%s5 + $0x80] sm:$0xff]
  %v2330 = vld [vmem:[%s5 + $0x88] sm:$0xff]
  %v2331 = vld [vmem:[%s5 + $0x90] sm:$0xff]
  %v2332 = vld [vmem:[%s5 + $0x98] sm:$0xff]
  %v2333 = vld [vmem:[%s5 + $0xa0] sm:$0xff]
  %v2334 = vld [vmem:[%s5 + $0xa8] sm:$0xff]
  %v2335 = vld [vmem:[%s5 + $0xb0] sm:$0xff]
  %v2336 = vld [vmem:[%s5 + $0xb8] sm:$0xff]
  %v2337 = vld [vmem:[%s5 + $0xc0] sm:$0xff]
  %v2338 = vld [vmem:[%s5 + $0xc8] sm:$0xff]
  %v2339 = vadd.f32 %v2287, 1e-05
  %v2340 = vadd.f32 %v2288, 1e-05
  %v2341 = vadd.f32 %v2289, 1e-05
  %v2342 = vadd.f32 %v2290, 1e-05
  %v2343 = vadd.f32 %v2291, 1e-05
  %v2344 = vadd.f32 %v2292, 1e-05
  %v2345 = vadd.f32 %v2293, 1e-05
  %v2346 = vadd.f32 %v2294, 1e-05
  %v2347 = vadd.f32 %v2295, 1e-05
  %v2348 = vadd.f32 %v2296, 1e-05
  %v2349 = vadd.f32 %v2297, 1e-05
  %v2350 = vadd.f32 %v2298, 1e-05
  %v2351 = vadd.f32 %v2299, 1e-05
  %v2352 = vadd.f32 %v2300, 1e-05
  %v2353 = vadd.f32 %v2301, 1e-05
  %v2354 = vadd.f32 %v2302, 1e-05
  %v2355 = vadd.f32 %v2303, 1e-05
  %v2356 = vadd.f32 %v2304, 1e-05
  %v2357 = vadd.f32 %v2305, 1e-05
  %v2358 = vadd.f32 %v2306, 1e-05
  %v2359 = vadd.f32 %v2307, 1e-05
  %v2360 = vadd.f32 %v2308, 1e-05
  %v2361 = vadd.f32 %v2309, 1e-05
  %v2362 = vadd.f32 %v2310, 1e-05
  %v2363 = vadd.f32 %v2311, 1e-05
  %v2364 = vadd.f32 %v2312, 1e-05
  %v2365 = vrsqrt.pop %v2339
  %v2366 = vmul.f32 %v2365, %v2339
  %v2367 = vmul.f32 %v2366, %v2365
  %v2368 = vmul.f32 0.5, %v2367
  %v2369 = vsub.f32 1.5, %v2368
  %v2370 = vmul.f32 %v2365, %v2369
  %vm2371 = vweird.f32 %v2339
  %vm2372 = vweird.f32 %v2365
  %vm2373 = vmor %vm2371, %vm2372
  %v2374 = vsel %vm2373, %v2365, %v2370
  %v2375 = vrsqrt.pop %v2340
  %v2376 = vmul.f32 %v2375, %v2340
  %v2377 = vmul.f32 %v2376, %v2375
  %v2378 = vmul.f32 0.5, %v2377
  %v2379 = vsub.f32 1.5, %v2378
  %v2380 = vmul.f32 %v2375, %v2379
  %vm2381 = vweird.f32 %v2340
  %vm2382 = vweird.f32 %v2375
  %vm2383 = vmor %vm2381, %vm2382
  %v2384 = vsel %vm2383, %v2375, %v2380
  %v2385 = vrsqrt.pop %v2341
  %v2386 = vmul.f32 %v2385, %v2341
  %v2387 = vmul.f32 %v2386, %v2385
  %v2388 = vmul.f32 0.5, %v2387
  %v2389 = vsub.f32 1.5, %v2388
  %v2390 = vmul.f32 %v2385, %v2389
  %vm2391 = vweird.f32 %v2341
  %vm2392 = vweird.f32 %v2385
  %vm2393 = vmor %vm2391, %vm2392
  %v2394 = vsel %vm2393, %v2385, %v2390
  %v2395 = vrsqrt.pop %v2342
  %v2396 = vmul.f32 %v2395, %v2342
  %v2397 = vmul.f32 %v2396, %v2395
  %v2398 = vmul.f32 0.5, %v2397
  %v2399 = vsub.f32 1.5, %v2398
  %v2400 = vmul.f32 %v2395, %v2399
  %vm2401 = vweird.f32 %v2342
  %vm2402 = vweird.f32 %v2395
  %vm2403 = vmor %vm2401, %vm2402
  %v2404 = vsel %vm2403, %v2395, %v2400
  %v2405 = vrsqrt.pop %v2343
  %v2406 = vmul.f32 %v2405, %v2343
  %v2407 = vmul.f32 %v2406, %v2405
  %v2408 = vmul.f32 0.5, %v2407
  %v2409 = vsub.f32 1.5, %v2408
  %v2410 = vmul.f32 %v2405, %v2409
  %vm2411 = vweird.f32 %v2343
  %vm2412 = vweird.f32 %v2405
  %vm2413 = vmor %vm2411, %vm2412
  %v2414 = vsel %vm2413, %v2405, %v2410
  %v2415 = vrsqrt.pop %v2344
  %v2416 = vmul.f32 %v2415, %v2344
  %v2417 = vmul.f32 %v2416, %v2415
  %v2418 = vmul.f32 0.5, %v2417
  %v2419 = vsub.f32 1.5, %v2418
  %v2420 = vmul.f32 %v2415, %v2419
  %vm2421 = vweird.f32 %v2344
  %vm2422 = vweird.f32 %v2415
  %vm2423 = vmor %vm2421, %vm2422
  %v2424 = vsel %vm2423, %v2415, %v2420
  %v2425 = vrsqrt.pop %v2345
  %v2426 = vmul.f32 %v2425, %v2345
  %v2427 = vmul.f32 %v2426, %v2425
  %v2428 = vmul.f32 0.5, %v2427
  %v2429 = vsub.f32 1.5, %v2428
  %v2430 = vmul.f32 %v2425, %v2429
  %vm2431 = vweird.f32 %v2345
  %vm2432 = vweird.f32 %v2425
  %vm2433 = vmor %vm2431, %vm2432
  %v2434 = vsel %vm2433, %v2425, %v2430
  %v2435 = vrsqrt.pop %v2346
  %v2436 = vmul.f32 %v2435, %v2346
  %v2437 = vmul.f32 %v2436, %v2435
  %v2438 = vmul.f32 0.5, %v2437
  %v2439 = vsub.f32 1.5, %v2438
  %v2440 = vmul.f32 %v2435, %v2439
  %vm2441 = vweird.f32 %v2346
  %vm2442 = vweird.f32 %v2435
  %vm2443 = vmor %vm2441, %vm2442
  %v2444 = vsel %vm2443, %v2435, %v2440
  %v2445 = vrsqrt.pop %v2347
  %v2446 = vmul.f32 %v2445, %v2347
  %v2447 = vmul.f32 %v2446, %v2445
  %v2448 = vmul.f32 0.5, %v2447
  %v2449 = vsub.f32 1.5, %v2448
  %v2450 = vmul.f32 %v2445, %v2449
  %vm2451 = vweird.f32 %v2347
  %vm2452 = vweird.f32 %v2445
  %vm2453 = vmor %vm2451, %vm2452
  %v2454 = vsel %vm2453, %v2445, %v2450
  %v2455 = vrsqrt.pop %v2348
  %v2456 = vmul.f32 %v2455, %v2348
  %v2457 = vmul.f32 %v2456, %v2455
  %v2458 = vmul.f32 0.5, %v2457
  %v2459 = vsub.f32 1.5, %v2458
  %v2460 = vmul.f32 %v2455, %v2459
  %vm2461 = vweird.f32 %v2348
  %vm2462 = vweird.f32 %v2455
  %vm2463 = vmor %vm2461, %vm2462
  %v2464 = vsel %vm2463, %v2455, %v2460
  %v2465 = vrsqrt.pop %v2349
  %v2466 = vmul.f32 %v2465, %v2349
  %v2467 = vmul.f32 %v2466, %v2465
  %v2468 = vmul.f32 0.5, %v2467
  %v2469 = vsub.f32 1.5, %v2468
  %v2470 = vmul.f32 %v2465, %v2469
  %vm2471 = vweird.f32 %v2349
  %vm2472 = vweird.f32 %v2465
  %vm2473 = vmor %vm2471, %vm2472
  %v2474 = vsel %vm2473, %v2465, %v2470
  %v2475 = vrsqrt.pop %v2350
  %v2476 = vmul.f32 %v2475, %v2350
  %v2477 = vmul.f32 %v2476, %v2475
  %v2478 = vmul.f32 0.5, %v2477
  %v2479 = vsub.f32 1.5, %v2478
  %v2480 = vmul.f32 %v2475, %v2479
  %vm2481 = vweird.f32 %v2350
  %vm2482 = vweird.f32 %v2475
  %vm2483 = vmor %vm2481, %vm2482
  %v2484 = vsel %vm2483, %v2475, %v2480
  %v2485 = vrsqrt.pop %v2351
  %v2486 = vmul.f32 %v2485, %v2351
  %v2487 = vmul.f32 %v2486, %v2485
  %v2488 = vmul.f32 0.5, %v2487
  %v2489 = vsub.f32 1.5, %v2488
  %v2490 = vmul.f32 %v2485, %v2489
  %vm2491 = vweird.f32 %v2351
  %vm2492 = vweird.f32 %v2485
  %vm2493 = vmor %vm2491, %vm2492
  %v2494 = vsel %vm2493, %v2485, %v2490
  %v2495 = vrsqrt.pop %v2352
  %v2496 = vmul.f32 %v2495, %v2352
  %v2497 = vmul.f32 %v2496, %v2495
  %v2498 = vmul.f32 0.5, %v2497
  %v2499 = vsub.f32 1.5, %v2498
  %v2500 = vmul.f32 %v2495, %v2499
  %vm2501 = vweird.f32 %v2352
  %vm2502 = vweird.f32 %v2495
  %vm2503 = vmor %vm2501, %vm2502
  %v2504 = vsel %vm2503, %v2495, %v2500
  %v2505 = vrsqrt.pop %v2353
  %v2506 = vmul.f32 %v2505, %v2353
  %v2507 = vmul.f32 %v2506, %v2505
  %v2508 = vmul.f32 0.5, %v2507
  %v2509 = vsub.f32 1.5, %v2508
  %v2510 = vmul.f32 %v2505, %v2509
  %vm2511 = vweird.f32 %v2353
  %vm2512 = vweird.f32 %v2505
  %vm2513 = vmor %vm2511, %vm2512
  %v2514 = vsel %vm2513, %v2505, %v2510
  %v2515 = vrsqrt.pop %v2354
  %v2516 = vmul.f32 %v2515, %v2354
  %v2517 = vmul.f32 %v2516, %v2515
  %v2518 = vmul.f32 0.5, %v2517
  %v2519 = vsub.f32 1.5, %v2518
  %v2520 = vmul.f32 %v2515, %v2519
  %vm2521 = vweird.f32 %v2354
  %vm2522 = vweird.f32 %v2515
  %vm2523 = vmor %vm2521, %vm2522
  %v2524 = vsel %vm2523, %v2515, %v2520
  %v2525 = vrsqrt.pop %v2355
  %v2526 = vmul.f32 %v2525, %v2355
  %v2527 = vmul.f32 %v2526, %v2525
  %v2528 = vmul.f32 0.5, %v2527
  %v2529 = vsub.f32 1.5, %v2528
  %v2530 = vmul.f32 %v2525, %v2529
  %vm2531 = vweird.f32 %v2355
  %vm2532 = vweird.f32 %v2525
  %vm2533 = vmor %vm2531, %vm2532
  %v2534 = vsel %vm2533, %v2525, %v2530
  %v2535 = vrsqrt.pop %v2356
  %v2536 = vmul.f32 %v2535, %v2356
  %v2537 = vmul.f32 %v2536, %v2535
  %v2538 = vmul.f32 0.5, %v2537
  %v2539 = vsub.f32 1.5, %v2538
  %v2540 = vmul.f32 %v2535, %v2539
  %vm2541 = vweird.f32 %v2356
  %vm2542 = vweird.f32 %v2535
  %vm2543 = vmor %vm2541, %vm2542
  %v2544 = vsel %vm2543, %v2535, %v2540
  %v2545 = vrsqrt.pop %v2357
  %v2546 = vmul.f32 %v2545, %v2357
  %v2547 = vmul.f32 %v2546, %v2545
  %v2548 = vmul.f32 0.5, %v2547
  %v2549 = vsub.f32 1.5, %v2548
  %v2550 = vmul.f32 %v2545, %v2549
  %vm2551 = vweird.f32 %v2357
  %vm2552 = vweird.f32 %v2545
  %vm2553 = vmor %vm2551, %vm2552
  %v2554 = vsel %vm2553, %v2545, %v2550
  %v2555 = vrsqrt.pop %v2358
  %v2556 = vmul.f32 %v2555, %v2358
  %v2557 = vmul.f32 %v2556, %v2555
  %v2558 = vmul.f32 0.5, %v2557
  %v2559 = vsub.f32 1.5, %v2558
  %v2560 = vmul.f32 %v2555, %v2559
  %vm2561 = vweird.f32 %v2358
  %vm2562 = vweird.f32 %v2555
  %vm2563 = vmor %vm2561, %vm2562
  %v2564 = vsel %vm2563, %v2555, %v2560
  %v2565 = vrsqrt.pop %v2359
  %v2566 = vmul.f32 %v2565, %v2359
  %v2567 = vmul.f32 %v2566, %v2565
  %v2568 = vmul.f32 0.5, %v2567
  %v2569 = vsub.f32 1.5, %v2568
  %v2570 = vmul.f32 %v2565, %v2569
  %vm2571 = vweird.f32 %v2359
  %vm2572 = vweird.f32 %v2565
  %vm2573 = vmor %vm2571, %vm2572
  %v2574 = vsel %vm2573, %v2565, %v2570
  %v2575 = vrsqrt.pop %v2360
  %v2576 = vmul.f32 %v2575, %v2360
  %v2577 = vmul.f32 %v2576, %v2575
  %v2578 = vmul.f32 0.5, %v2577
  %v2579 = vsub.f32 1.5, %v2578
  %v2580 = vmul.f32 %v2575, %v2579
  %vm2581 = vweird.f32 %v2360
  %vm2582 = vweird.f32 %v2575
  %vm2583 = vmor %vm2581, %vm2582
  %v2584 = vsel %vm2583, %v2575, %v2580
  %v2585 = vrsqrt.pop %v2361
  %v2586 = vmul.f32 %v2585, %v2361
  %v2587 = vmul.f32 %v2586, %v2585
  %v2588 = vmul.f32 0.5, %v2587
  %v2589 = vsub.f32 1.5, %v2588
  %v2590 = vmul.f32 %v2585, %v2589
  %vm2591 = vweird.f32 %v2361
  %vm2592 = vweird.f32 %v2585
  %vm2593 = vmor %vm2591, %vm2592
  %v2594 = vsel %vm2593, %v2585, %v2590
  %v2595 = vrsqrt.pop %v2362
  %v2596 = vmul.f32 %v2595, %v2362
  %v2597 = vmul.f32 %v2596, %v2595
  %v2598 = vmul.f32 0.5, %v2597
  %v2599 = vsub.f32 1.5, %v2598
  %v2600 = vmul.f32 %v2595, %v2599
  %vm2601 = vweird.f32 %v2362
  %vm2602 = vweird.f32 %v2595
  %vm2603 = vmor %vm2601, %vm2602
  %v2604 = vsel %vm2603, %v2595, %v2600
  %v2605 = vrsqrt.pop %v2363
  %v2606 = vmul.f32 %v2605, %v2363
  %v2607 = vmul.f32 %v2606, %v2605
  %v2608 = vmul.f32 0.5, %v2607
  %v2609 = vsub.f32 1.5, %v2608
  %v2610 = vmul.f32 %v2605, %v2609
  %vm2611 = vweird.f32 %v2363
  %vm2612 = vweird.f32 %v2605
  %vm2613 = vmor %vm2611, %vm2612
  %v2614 = vsel %vm2613, %v2605, %v2610
  %v2615 = vrsqrt.pop %v2364
  %v2616 = vmul.f32 %v2615, %v2364
  %v2617 = vmul.f32 %v2616, %v2615
  %v2618 = vmul.f32 0.5, %v2617
  %v2619 = vsub.f32 1.5, %v2618
  %v2620 = vmul.f32 %v2615, %v2619
  %vm2621 = vweird.f32 %v2364
  %vm2622 = vweird.f32 %v2615
  %vm2623 = vmor %vm2621, %vm2622
  %v2624 = vsel %vm2623, %v2615, %v2620
  %v2625 = vmul.f32 %v2313, %v2374
  %v2626 = vmul.f32 %v2314, %v2384
  %v2627 = vmul.f32 %v2315, %v2394
  %v2628 = vmul.f32 %v2316, %v2404
  %v2629 = vmul.f32 %v2317, %v2414
  %v2630 = vmul.f32 %v2318, %v2424
  %v2631 = vmul.f32 %v2319, %v2434
  %v2632 = vmul.f32 %v2320, %v2444
  %v2633 = vmul.f32 %v2321, %v2454
  %v2634 = vmul.f32 %v2322, %v2464
  %v2635 = vmul.f32 %v2323, %v2474
  %v2636 = vmul.f32 %v2324, %v2484
  %v2637 = vmul.f32 %v2325, %v2494
  %v2638 = vmul.f32 %v2326, %v2504
  %v2639 = vmul.f32 %v2327, %v2514
  %v2640 = vmul.f32 %v2328, %v2524
  %v2641 = vmul.f32 %v2329, %v2534
  %v2642 = vmul.f32 %v2330, %v2544
  %v2643 = vmul.f32 %v2331, %v2554
  %v2644 = vmul.f32 %v2332, %v2564
  %v2645 = vmul.f32 %v2333, %v2574
  %v2646 = vmul.f32 %v2334, %v2584
  %v2647 = vmul.f32 %v2335, %v2594
  %v2648 = vmul.f32 %v2336, %v2604
  %v2649 = vmul.f32 %v2337, %v2614
  %v2650 = vmul.f32 %v2338, %v2624
  %v2651 = vld [vmem:[%s6] sm:$0xff]
  %v2652 = vld [vmem:[%s6 + $0x8] sm:$0xff]
  %v2653 = vld [vmem:[%s6 + $0x10] sm:$0xff]
  %v2654 = vld [vmem:[%s6 + $0x18] sm:$0xff]
  %v2655 = vld [vmem:[%s6 + $0x20] sm:$0xff]
  %v2656 = vld [vmem:[%s6 + $0x28] sm:$0xff]
  %v2657 = vld [vmem:[%s6 + $0x30] sm:$0xff]
  %v2658 = vld [vmem:[%s6 + $0x38] sm:$0xff]
  %v2659 = vld [vmem:[%s6 + $0x40] sm:$0xff]
  %v2660 = vld [vmem:[%s6 + $0x48] sm:$0xff]
  %v2661 = vld [vmem:[%s6 + $0x50] sm:$0xff]
  %v2662 = vld [vmem:[%s6 + $0x58] sm:$0xff]
  %v2663 = vld [vmem:[%s6 + $0x60] sm:$0xff]
  %v2664 = vld [vmem:[%s6 + $0x68] sm:$0xff]
  %v2665 = vld [vmem:[%s6 + $0x70] sm:$0xff]
  %v2666 = vld [vmem:[%s6 + $0x78] sm:$0xff]
  %v2667 = vld [vmem:[%s6 + $0x80] sm:$0xff]
  %v2668 = vld [vmem:[%s6 + $0x88] sm:$0xff]
  %v2669 = vld [vmem:[%s6 + $0x90] sm:$0xff]
  %v2670 = vld [vmem:[%s6 + $0x98] sm:$0xff]
  %v2671 = vld [vmem:[%s6 + $0xa0] sm:$0xff]
  %v2672 = vld [vmem:[%s6 + $0xa8] sm:$0xff]
  %v2673 = vld [vmem:[%s6 + $0xb0] sm:$0xff]
  %v2674 = vld [vmem:[%s6 + $0xb8] sm:$0xff]
  %v2675 = vld [vmem:[%s6 + $0xc0] sm:$0xff]
  %v2676 = vld [vmem:[%s6 + $0xc8] sm:$0xff]
  %v2677 = vmul.f32 %v2027, %v2625
  %v2678 = vmul.f32 %v2028, %v2626
  %v2679 = vmul.f32 %v2029, %v2627
  %v2680 = vmul.f32 %v2030, %v2628
  %v2681 = vmul.f32 %v2031, %v2629
  %v2682 = vmul.f32 %v2032, %v2630
  %v2683 = vmul.f32 %v2033, %v2631
  %v2684 = vmul.f32 %v2034, %v2632
  %v2685 = vmul.f32 %v2035, %v2633
  %v2686 = vmul.f32 %v2036, %v2634
  %v2687 = vmul.f32 %v2037, %v2635
  %v2688 = vmul.f32 %v2038, %v2636
  %v2689 = vmul.f32 %v2039, %v2637
  %v2690 = vmul.f32 %v2040, %v2638
  %v2691 = vmul.f32 %v2041, %v2639
  %v2692 = vmul.f32 %v2042, %v2640
  %v2693 = vmul.f32 %v2043, %v2641
  %v2694 = vmul.f32 %v2044, %v2642
  %v2695 = vmul.f32 %v2045, %v2643
  %v2696 = vmul.f32 %v2046, %v2644
  %v2697 = vmul.f32 %v2047, %v2645
  %v2698 = vmul.f32 %v2048, %v2646
  %v2699 = vmul.f32 %v2049, %v2647
  %v2700 = vmul.f32 %v2050, %v2648
  %v2701 = vmul.f32 %v2051, %v2649
  %v2702 = vmul.f32 %v2052, %v2650
  %v2703 = vsub.f32 %v2651, %v2677
  %v2704 = vsub.f32 %v2652, %v2678
  %v2705 = vsub.f32 %v2653, %v2679
  %v2706 = vsub.f32 %v2654, %v2680
  %v2707 = vsub.f32 %v2655, %v2681
  %v2708 = vsub.f32 %v2656, %v2682
  %v2709 = vsub.f32 %v2657, %v2683
  %v2710 = vsub.f32 %v2658, %v2684
  %v2711 = vsub.f32 %v2659, %v2685
  %v2712 = vsub.f32 %v2660, %v2686
  %v2713 = vsub.f32 %v2661, %v2687
  %v2714 = vsub.f32 %v2662, %v2688
  %v2715 = vsub.f32 %v2663, %v2689
  %v2716 = vsub.f32 %v2664, %v2690
  %v2717 = vsub.f32 %v2665, %v2691
  %v2718 = vsub.f32 %v2666, %v2692
  %v2719 = vsub.f32 %v2667, %v2693
  %v2720 = vsub.f32 %v2668, %v2694
  %v2721 = vsub.f32 %v2669, %v2695
  %v2722 = vsub.f32 %v2670, %v2696
  %v2723 = vsub.f32 %v2671, %v2697
  %v2724 = vsub.f32 %v2672, %v2698
  %v2725 = vsub.f32 %v2673, %v2699
  %v2726 = vsub.f32 %v2674, %v2700
  %v2727 = vsub.f32 %v2675, %v2701
  %v2728 = vsub.f32 %v2676, %v2702
  %2730 = vset.pattern.permute.xlu0 0
  %2731 = vperm.xlu0 %2730, %v2625
  %v2732 = vpop.permute.xlu0 %2731
  %2735 = vset.pattern.permute.xlu0 0
  %2736 = vperm.xlu0 %2735, %v2626
  %v2737 = vpop.permute.xlu0 %2736
  %2740 = vset.pattern.permute.xlu0 0
  %2741 = vperm.xlu0 %2740, %v2627
  %v2742 = vpop.permute.xlu0 %2741
  %2745 = vset.pattern.permute.xlu0 0
  %2746 = vperm.xlu0 %2745, %v2628
  %v2747 = vpop.permute.xlu0 %2746
  %2750 = vset.pattern.permute.xlu0 0
  %2751 = vperm.xlu0 %2750, %v2629
  %v2752 = vpop.permute.xlu0 %2751
  %2755 = vset.pattern.permute.xlu0 0
  %2756 = vperm.xlu0 %2755, %v2630
  %v2757 = vpop.permute.xlu0 %2756
  %2760 = vset.pattern.permute.xlu0 0
  %2761 = vperm.xlu0 %2760, %v2631
  %v2762 = vpop.permute.xlu0 %2761
  %2765 = vset.pattern.permute.xlu0 0
  %2766 = vperm.xlu0 %2765, %v2632
  %v2767 = vpop.permute.xlu0 %2766
  %2770 = vset.pattern.permute.xlu0 0
  %2771 = vperm.xlu0 %2770, %v2633
  %v2772 = vpop.permute.xlu0 %2771
  %2775 = vset.pattern.permute.xlu0 0
  %2776 = vperm.xlu0 %2775, %v2634
  %v2777 = vpop.permute.xlu0 %2776
  %2780 = vset.pattern.permute.xlu0 0
  %2781 = vperm.xlu0 %2780, %v2635
  %v2782 = vpop.permute.xlu0 %2781
  %2785 = vset.pattern.permute.xlu0 0
  %2786 = vperm.xlu0 %2785, %v2636
  %v2787 = vpop.permute.xlu0 %2786
  %2790 = vset.pattern.permute.xlu0 0
  %2791 = vperm.xlu0 %2790, %v2637
  %v2792 = vpop.permute.xlu0 %2791
  %2795 = vset.pattern.permute.xlu0 0
  %2796 = vperm.xlu0 %2795, %v2638
  %v2797 = vpop.permute.xlu0 %2796
  %2800 = vset.pattern.permute.xlu0 0
  %2801 = vperm.xlu0 %2800, %v2639
  %v2802 = vpop.permute.xlu0 %2801
  %2805 = vset.pattern.permute.xlu0 0
  %2806 = vperm.xlu0 %2805, %v2640
  %v2807 = vpop.permute.xlu0 %2806
  %2810 = vset.pattern.permute.xlu0 0
  %2811 = vperm.xlu0 %2810, %v2641
  %v2812 = vpop.permute.xlu0 %2811
  %2815 = vset.pattern.permute.xlu0 0
  %2816 = vperm.xlu0 %2815, %v2642
  %v2817 = vpop.permute.xlu0 %2816
  %2820 = vset.pattern.permute.xlu0 0
  %2821 = vperm.xlu0 %2820, %v2643
  %v2822 = vpop.permute.xlu0 %2821
  %2825 = vset.pattern.permute.xlu0 0
  %2826 = vperm.xlu0 %2825, %v2644
  %v2827 = vpop.permute.xlu0 %2826
  %2830 = vset.pattern.permute.xlu0 0
  %2831 = vperm.xlu0 %2830, %v2645
  %v2832 = vpop.permute.xlu0 %2831
  %2835 = vset.pattern.permute.xlu0 0
  %2836 = vperm.xlu0 %2835, %v2646
  %v2837 = vpop.permute.xlu0 %2836
  %2840 = vset.pattern.permute.xlu0 0
  %2841 = vperm.xlu0 %2840, %v2647
  %v2842 = vpop.permute.xlu0 %2841
  %2845 = vset.pattern.permute.xlu0 0
  %2846 = vperm.xlu0 %2845, %v2648
  %v2847 = vpop.permute.xlu0 %2846
  %2850 = vset.pattern.permute.xlu0 0
  %2851 = vperm.xlu0 %2850, %v2649
  %v2852 = vpop.permute.xlu0 %2851
  %2855 = vset.pattern.permute.xlu0 0
  %2856 = vperm.xlu0 %2855, %v2650
  %v2857 = vpop.permute.xlu0 %2856
  %v2859 = vmul.f32 %v1656, %v2732
  %v2860 = vmul.f32 %v1846, %v2732
  %v2861 = vmul.f32 %v1659, %v2737
  %v2862 = vmul.f32 %v1849, %v2737
  %v2863 = vmul.f32 %v1662, %v2742
  %v2864 = vmul.f32 %v1852, %v2742
  %v2865 = vmul.f32 %v1665, %v2747
  %v2866 = vmul.f32 %v1855, %v2747
  %v2867 = vmul.f32 %v1668, %v2752
  %v2868 = vmul.f32 %v1858, %v2752
  %v2869 = vmul.f32 %v1671, %v2757
  %v2870 = vmul.f32 %v1861, %v2757
  %v2871 = vmul.f32 %v1674, %v2762
  %v2872 = vmul.f32 %v1864, %v2762
  %v2873 = vmul.f32 %v1677, %v2767
  %v2874 = vmul.f32 %v1867, %v2767
  %v2875 = vmul.f32 %v1680, %v2772
  %v2876 = vmul.f32 %v1870, %v2772
  %v2877 = vmul.f32 %v1683, %v2777
  %v2878 = vmul.f32 %v1873, %v2777
  %v2879 = vmul.f32 %v1686, %v2782
  %v2880 = vmul.f32 %v1876, %v2782
  %v2881 = vmul.f32 %v1689, %v2787
  %v2882 = vmul.f32 %v1879, %v2787
  %v2883 = vmul.f32 %v1692, %v2792
  %v2884 = vmul.f32 %v1882, %v2792
  %v2885 = vmul.f32 %v1695, %v2797
  %v2886 = vmul.f32 %v1885, %v2797
  %v2887 = vmul.f32 %v1698, %v2802
  %v2888 = vmul.f32 %v1888, %v2802
  %v2889 = vmul.f32 %v1701, %v2807
  %v2890 = vmul.f32 %v1891, %v2807
  %v2891 = vmul.f32 %v1704, %v2812
  %v2892 = vmul.f32 %v1894, %v2812
  %v2893 = vmul.f32 %v1707, %v2817
  %v2894 = vmul.f32 %v1897, %v2817
  %v2895 = vmul.f32 %v1710, %v2822
  %v2896 = vmul.f32 %v1900, %v2822
  %v2897 = vmul.f32 %v1713, %v2827
  %v2898 = vmul.f32 %v1903, %v2827
  %v2899 = vmul.f32 %v1716, %v2832
  %v2900 = vmul.f32 %v1906, %v2832
  %v2901 = vmul.f32 %v1719, %v2837
  %v2902 = vmul.f32 %v1909, %v2837
  %v2903 = vmul.f32 %v1722, %v2842
  %v2904 = vmul.f32 %v1912, %v2842
  %v2905 = vmul.f32 %v1725, %v2847
  %v2906 = vmul.f32 %v1915, %v2847
  %v2907 = vmul.f32 %v1728, %v2852
  %v2908 = vmul.f32 %v1918, %v2852
  %v2909 = vmul.f32 %v1731, %v2857
  %v2910 = vmul.f32 %v1921, %v2857
  %2912 = vset.pattern.permute.xlu0 0
  %2913 = vperm.xlu0 %2912, %v2703
  %v2914 = vpop.permute.xlu0 %2913
  %2917 = vset.pattern.permute.xlu0 0
  %2918 = vperm.xlu0 %2917, %v2704
  %v2919 = vpop.permute.xlu0 %2918
  %2922 = vset.pattern.permute.xlu0 0
  %2923 = vperm.xlu0 %2922, %v2705
  %v2924 = vpop.permute.xlu0 %2923
  %2927 = vset.pattern.permute.xlu0 0
  %2928 = vperm.xlu0 %2927, %v2706
  %v2929 = vpop.permute.xlu0 %2928
  %2932 = vset.pattern.permute.xlu0 0
  %2933 = vperm.xlu0 %2932, %v2707
  %v2934 = vpop.permute.xlu0 %2933
  %2937 = vset.pattern.permute.xlu0 0
  %2938 = vperm.xlu0 %2937, %v2708
  %v2939 = vpop.permute.xlu0 %2938
  %2942 = vset.pattern.permute.xlu0 0
  %2943 = vperm.xlu0 %2942, %v2709
  %v2944 = vpop.permute.xlu0 %2943
  %2947 = vset.pattern.permute.xlu0 0
  %2948 = vperm.xlu0 %2947, %v2710
  %v2949 = vpop.permute.xlu0 %2948
  %2952 = vset.pattern.permute.xlu0 0
  %2953 = vperm.xlu0 %2952, %v2711
  %v2954 = vpop.permute.xlu0 %2953
  %2957 = vset.pattern.permute.xlu0 0
  %2958 = vperm.xlu0 %2957, %v2712
  %v2959 = vpop.permute.xlu0 %2958
  %2962 = vset.pattern.permute.xlu0 0
  %2963 = vperm.xlu0 %2962, %v2713
  %v2964 = vpop.permute.xlu0 %2963
  %2967 = vset.pattern.permute.xlu0 0
  %2968 = vperm.xlu0 %2967, %v2714
  %v2969 = vpop.permute.xlu0 %2968
  %2972 = vset.pattern.permute.xlu0 0
  %2973 = vperm.xlu0 %2972, %v2715
  %v2974 = vpop.permute.xlu0 %2973
  %2977 = vset.pattern.permute.xlu0 0
  %2978 = vperm.xlu0 %2977, %v2716
  %v2979 = vpop.permute.xlu0 %2978
  %2982 = vset.pattern.permute.xlu0 0
  %2983 = vperm.xlu0 %2982, %v2717
  %v2984 = vpop.permute.xlu0 %2983
  %2987 = vset.pattern.permute.xlu0 0
  %2988 = vperm.xlu0 %2987, %v2718
  %v2989 = vpop.permute.xlu0 %2988
  %2992 = vset.pattern.permute.xlu0 0
  %2993 = vperm.xlu0 %2992, %v2719
  %v2994 = vpop.permute.xlu0 %2993
  %2997 = vset.pattern.permute.xlu0 0
  %2998 = vperm.xlu0 %2997, %v2720
  %v2999 = vpop.permute.xlu0 %2998
  %3002 = vset.pattern.permute.xlu0 0
  %3003 = vperm.xlu0 %3002, %v2721
  %v3004 = vpop.permute.xlu0 %3003
  %3007 = vset.pattern.permute.xlu0 0
  %3008 = vperm.xlu0 %3007, %v2722
  %v3009 = vpop.permute.xlu0 %3008
  %3012 = vset.pattern.permute.xlu0 0
  %3013 = vperm.xlu0 %3012, %v2723
  %v3014 = vpop.permute.xlu0 %3013
  %3017 = vset.pattern.permute.xlu0 0
  %3018 = vperm.xlu0 %3017, %v2724
  %v3019 = vpop.permute.xlu0 %3018
  %3022 = vset.pattern.permute.xlu0 0
  %3023 = vperm.xlu0 %3022, %v2725
  %v3024 = vpop.permute.xlu0 %3023
  %3027 = vset.pattern.permute.xlu0 0
  %3028 = vperm.xlu0 %3027, %v2726
  %v3029 = vpop.permute.xlu0 %3028
  %3032 = vset.pattern.permute.xlu0 0
  %3033 = vperm.xlu0 %3032, %v2727
  %v3034 = vpop.permute.xlu0 %3033
  %3037 = vset.pattern.permute.xlu0 0
  %3038 = vperm.xlu0 %3037, %v2728
  %v3039 = vpop.permute.xlu0 %3038
  %v3041 = vadd.f32 %v2859, %v2914
  %v3042 = vadd.f32 %v2860, %v2914
  %v3043 = vadd.f32 %v2861, %v2919
  %v3044 = vadd.f32 %v2862, %v2919
  %v3045 = vadd.f32 %v2863, %v2924
  %v3046 = vadd.f32 %v2864, %v2924
  %v3047 = vadd.f32 %v2865, %v2929
  %v3048 = vadd.f32 %v2866, %v2929
  %v3049 = vadd.f32 %v2867, %v2934
  %v3050 = vadd.f32 %v2868, %v2934
  %v3051 = vadd.f32 %v2869, %v2939
  %v3052 = vadd.f32 %v2870, %v2939
  %v3053 = vadd.f32 %v2871, %v2944
  %v3054 = vadd.f32 %v2872, %v2944
  %v3055 = vadd.f32 %v2873, %v2949
  %v3056 = vadd.f32 %v2874, %v2949
  %v3057 = vadd.f32 %v2875, %v2954
  %v3058 = vadd.f32 %v2876, %v2954
  %v3059 = vadd.f32 %v2877, %v2959
  %v3060 = vadd.f32 %v2878, %v2959
  %v3061 = vadd.f32 %v2879, %v2964
  %v3062 = vadd.f32 %v2880, %v2964
  %v3063 = vadd.f32 %v2881, %v2969
  %v3064 = vadd.f32 %v2882, %v2969
  %v3065 = vadd.f32 %v2883, %v2974
  %v3066 = vadd.f32 %v2884, %v2974
  %v3067 = vadd.f32 %v2885, %v2979
  %v3068 = vadd.f32 %v2886, %v2979
  %v3069 = vadd.f32 %v2887, %v2984
  %v3070 = vadd.f32 %v2888, %v2984
  %v3071 = vadd.f32 %v2889, %v2989
  %v3072 = vadd.f32 %v2890, %v2989
  %v3073 = vadd.f32 %v2891, %v2994
  %v3074 = vadd.f32 %v2892, %v2994
  %v3075 = vadd.f32 %v2893, %v2999
  %v3076 = vadd.f32 %v2894, %v2999
  %v3077 = vadd.f32 %v2895, %v3004
  %v3078 = vadd.f32 %v2896, %v3004
  %v3079 = vadd.f32 %v2897, %v3009
  %v3080 = vadd.f32 %v2898, %v3009
  %v3081 = vadd.f32 %v2899, %v3014
  %v3082 = vadd.f32 %v2900, %v3014
  %v3083 = vadd.f32 %v2901, %v3019
  %v3084 = vadd.f32 %v2902, %v3019
  %v3085 = vadd.f32 %v2903, %v3024
  %v3086 = vadd.f32 %v2904, %v3024
  %v3087 = vadd.f32 %v2905, %v3029
  %v3088 = vadd.f32 %v2906, %v3029
  %v3089 = vadd.f32 %v2907, %v3034
  %v3090 = vadd.f32 %v2908, %v3034
  %v3091 = vadd.f32 %v2909, %v3039
  %v3092 = vadd.f32 %v2910, %v3039
  %3093 = vst [vmem:[%s7] sm:$0xff] %v3041
  %3094 = vst.msk [vmem:[%s7 + $0x8] sm:$0xff] %vm130, %v3042
  %3095 = vst [vmem:[%s7 + $0x10] sm:$0xff] %v3043
  %3096 = vst.msk [vmem:[%s7 + $0x18] sm:$0xff] %vm130, %v3044
  %3097 = vst [vmem:[%s7 + $0x20] sm:$0xff] %v3045
  %3098 = vst.msk [vmem:[%s7 + $0x28] sm:$0xff] %vm130, %v3046
  %3099 = vst [vmem:[%s7 + $0x30] sm:$0xff] %v3047
  %3100 = vst.msk [vmem:[%s7 + $0x38] sm:$0xff] %vm130, %v3048
  %3101 = vst [vmem:[%s7 + $0x40] sm:$0xff] %v3049
  %3102 = vst.msk [vmem:[%s7 + $0x48] sm:$0xff] %vm130, %v3050
  %3103 = vst [vmem:[%s7 + $0x50] sm:$0xff] %v3051
  %3104 = vst.msk [vmem:[%s7 + $0x58] sm:$0xff] %vm130, %v3052
  %3105 = vst [vmem:[%s7 + $0x60] sm:$0xff] %v3053
  %3106 = vst.msk [vmem:[%s7 + $0x68] sm:$0xff] %vm130, %v3054
  %3107 = vst [vmem:[%s7 + $0x70] sm:$0xff] %v3055
  %3108 = vst.msk [vmem:[%s7 + $0x78] sm:$0xff] %vm130, %v3056
  %3109 = vst [vmem:[%s7 + $0x80] sm:$0xff] %v3057
  %3110 = vst.msk [vmem:[%s7 + $0x88] sm:$0xff] %vm130, %v3058
  %3111 = vst [vmem:[%s7 + $0x90] sm:$0xff] %v3059
  %3112 = vst.msk [vmem:[%s7 + $0x98] sm:$0xff] %vm130, %v3060
  %3113 = vst [vmem:[%s7 + $0xa0] sm:$0xff] %v3061
  %3114 = vst.msk [vmem:[%s7 + $0xa8] sm:$0xff] %vm130, %v3062
  %3115 = vst [vmem:[%s7 + $0xb0] sm:$0xff] %v3063
  %3116 = vst.msk [vmem:[%s7 + $0xb8] sm:$0xff] %vm130, %v3064
  %3117 = vst [vmem:[%s7 + $0xc0] sm:$0xff] %v3065
  %3118 = vst.msk [vmem:[%s7 + $0xc8] sm:$0xff] %vm130, %v3066
  %3119 = vst [vmem:[%s7 + $0xd0] sm:$0xff] %v3067
  %3120 = vst.msk [vmem:[%s7 + $0xd8] sm:$0xff] %vm130, %v3068
  %3121 = vst [vmem:[%s7 + $0xe0] sm:$0xff] %v3069
  %3122 = vst.msk [vmem:[%s7 + $0xe8] sm:$0xff] %vm130, %v3070
  %3123 = vst [vmem:[%s7 + $0xf0] sm:$0xff] %v3071
  %3124 = vst.msk [vmem:[%s7 + $0xf8] sm:$0xff] %vm130, %v3072
  %3125 = vst [vmem:[%s7 + $0x100] sm:$0xff] %v3073
  %3126 = vst.msk [vmem:[%s7 + $0x108] sm:$0xff] %vm130, %v3074
  %3127 = vst [vmem:[%s7 + $0x110] sm:$0xff] %v3075
  %3128 = vst.msk [vmem:[%s7 + $0x118] sm:$0xff] %vm130, %v3076
  %3129 = vst [vmem:[%s7 + $0x120] sm:$0xff] %v3077
  %3130 = vst.msk [vmem:[%s7 + $0x128] sm:$0xff] %vm130, %v3078
  %3131 = vst [vmem:[%s7 + $0x130] sm:$0xff] %v3079
  %3132 = vst.msk [vmem:[%s7 + $0x138] sm:$0xff] %vm130, %v3080
  %3133 = vst [vmem:[%s7 + $0x140] sm:$0xff] %v3081
  %3134 = vst.msk [vmem:[%s7 + $0x148] sm:$0xff] %vm130, %v3082
  %3135 = vst [vmem:[%s7 + $0x150] sm:$0xff] %v3083
  %3136 = vst.msk [vmem:[%s7 + $0x158] sm:$0xff] %vm130, %v3084
  %3137 = vst [vmem:[%s7 + $0x160] sm:$0xff] %v3085
  %3138 = vst.msk [vmem:[%s7 + $0x168] sm:$0xff] %vm130, %v3086
  %3139 = vst [vmem:[%s7 + $0x170] sm:$0xff] %v3087
  %3140 = vst.msk [vmem:[%s7 + $0x178] sm:$0xff] %vm130, %v3088
  %3141 = vst [vmem:[%s7 + $0x180] sm:$0xff] %v3089
  %3142 = vst.msk [vmem:[%s7 + $0x188] sm:$0xff] %vm130, %v3090
  %3143 = vst [vmem:[%s7 + $0x190] sm:$0xff] %v3091
  %3144 = vst.msk [vmem:[%s7 + $0x198] sm:$0xff] %vm130, %v3092
  // Predicated region
  $region30: #{tpu_custom_call.1} parent=0 // pred_check
    _
  $region31: #{tpu_custom_call.1} parent=0 // pred_check_branch
    %3146 = sbr.rel (0) target = $region33
  $region32: #{tpu_custom_call.1} parent=0 // pred_region
    _
  $region33: #{tpu_custom_call.1} parent=0 // pred_fallthru
    _
  // Predicated region
  $region34: #{tpu_custom_call.1} parent=0 // pred_check
    _
  $region35: #{tpu_custom_call.1} parent=0 // pred_check_branch
    %3148 = sbr.rel (0) target = $region37
  $region36: #{tpu_custom_call.1} parent=0 // pred_region
    _
  $region37: #{tpu_custom_call.1} parent=0 // pred_fallthru
    _

</llo_original>
